<compile_context>
chip_gen: v6e
topology: v6e:2x2x1
jax: 0.10.0
libtpu: 0.0.40
codegen_flags: <defaults>
</compile_context>

<pallas_src>
import functools

import jax
import jax.numpy as jnp
from jax.experimental import pallas as pl
from jax.experimental.pallas import tpu as pltpu


def _pad16(n):
    return ((n + 15) // 16) * 16


def _slab_layout(input_size, hidden_size, num_layers):
    """Row offsets of each weight block inside the packed bf16 weight slab (128 lanes wide).

    Every block starts on a 16-row boundary so bf16 sublane packing stays aligned.
    """
    I, H, L = input_size, hidden_size, num_layers
    offs = {}
    r = 0

    def alloc(name, rows):
        nonlocal r
        offs[name] = r
        r += _pad16(rows)

    alloc("wih0", I)           # (I, H)  layer-0 input->hidden (transposed)
    alloc("whh0", H)           # (H, H)  layer-0 hidden->hidden (transposed)
    for l in range(1, L):
        alloc(f"wih{l}", H)    # (H, H)
        alloc(f"whh{l}", H)    # (H, H)
    alloc("w1", H)             # (H, 64) fc1 (transposed)
    alloc("w2", 64)            # (64, 128) fc2 (transposed, lane-padded)
    return offs, r


def rnn_forward_kernel(x_ref, h0_ref, w_ref, b_ref, out_ref, *,
                       num_layers, seq_len, batch_p, input_size, hidden_size, w_offs):
    """Whole forward pass in one invocation (all operands resident in VMEM).

    x_ref  : (T*Bp, I)  bf16  time-major, batch-padded, flattened input
    h0_ref : (L, Bp, H) f32   initial hidden states (batch-padded)
    w_ref  : (R, 128)   bf16  packed weight slab (see _slab_layout)
    b_ref  : (BR, 128)  f32   packed bias slab (row 0: b0, rows 1..L-1: b_l, row L: b1, L+1: b2)
    out_ref: (Bp, 128)  f32   result in column 0, rows [:B]
    """
    L, T, Bp, I, H = num_layers, seq_len, batch_p, input_size, hidden_size
    bf16 = jnp.bfloat16

    W = w_ref[...]                                   # (R, 128) bf16
    Bv = b_ref[...]                                  # (BR, 128) f32

    # ---- hoisted static weight/bias slices (outside the time loop) --------------------
    o = w_offs["wih0"]; wih0 = W[o:o + I, 0:H]       # (I, H)
    o = w_offs["whh0"]; whh0 = W[o:o + H, 0:H]       # (H, H)
    b0 = Bv[0:1, 0:H]                                # (1, H)

    wih_l, whh_l, b_l = [], [], []
    for l in range(1, L):
        o = w_offs[f"wih{l}"]; wih_l.append(W[o:o + H, 0:H])
        o = w_offs[f"whh{l}"]; whh_l.append(W[o:o + H, 0:H])
        b_l.append(Bv[l:l + 1, 0:H])

    o = w_offs["w1"]; w1 = W[o:o + H, 0:64]          # (H, 64)
    o = w_offs["w2"]; w2 = W[o:o + 64, 0:128]        # (64, 128)
    b1 = Bv[L:L + 1, 0:64]
    b2 = Bv[L + 1:L + 2, 0:128]

    # ---- hoisted layer-0 input projection: one matmul for all T steps, bias folded ----
    xp = jnp.dot(x_ref[...], wih0,
                 preferred_element_type=jnp.float32) + b0        # (T*Bp, H) f32

    # tuple carry: one (Bp, H) f32 array per layer; time loop statically unrolled
    h = tuple(h0_ref[l] for l in range(L))

    for t in range(T):
        x_t = xp[t * Bp:(t + 1) * Bp, :]                          # (Bp, H) static slice
        # layer 0: recurrent matmul only (input term precomputed)
        h_new = [jnp.tanh(x_t + jnp.dot(h[0].astype(bf16), whh0,
                                        preferred_element_type=jnp.float32))]
        # layers > 0: two separate dots (no lane-axis concat), summed in one expression
        for l in range(1, L):
            gate = (jnp.dot(h_new[l - 1].astype(bf16), wih_l[l - 1],
                            preferred_element_type=jnp.float32)
                    + jnp.dot(h[l].astype(bf16), whh_l[l - 1],
                              preferred_element_type=jnp.float32)
                    + b_l[l - 1])
            h_new.append(jnp.tanh(gate))
        h = tuple(h_new)

    # rnn_out[:, -1, :] == top-layer hidden state at the final step
    last = h[L - 1]                                               # (Bp, H) f32

    z1 = jnp.dot(last.astype(bf16), w1, preferred_element_type=jnp.float32) + b1
    z1 = jnp.maximum(z1, 0.0)                                     # ReLU, f32
    z2 = jnp.dot(z1.astype(bf16), w2, preferred_element_type=jnp.float32) + b2
    out_ref[...] = z2.astype(out_ref.dtype)                       # (Bp, 128), unmasked store


def rnn_model_forward(x, h0, params):
    """x: (B, T, input_size), h0: (num_layers, B, hidden_size) -> (B,) like torch.flatten."""
    B, T, I = x.shape
    L, _, H = h0.shape
    Bp = max(8, ((B + 7) // 8) * 8)   # pad batch to full sublanes

    # pad batch, go time-major, flatten to 2-D, cast to bf16 (pure layout/cast in the wrapper)
    x_pad = jnp.zeros((Bp, T, I), x.dtype).at[:B].set(x)
    h0_pad = jnp.zeros((L, Bp, H), h0.dtype).at[:, :B].set(h0)
    x_tm = jnp.transpose(x_pad, (1, 0, 2)).reshape(T * Bp, I).astype(jnp.bfloat16)

    w_offs, _ = _slab_layout(I, H, L)
    kernel = functools.partial(rnn_forward_kernel,
                               num_layers=L, seq_len=T, batch_p=Bp,
                               input_size=I, hidden_size=H, w_offs=w_offs)

    out = pl.pallas_call(
        kernel,
        out_shape=jax.ShapeDtypeStruct((Bp, 128), jnp.float32),
        in_specs=[pl.BlockSpec(memory_space=pltpu.MemorySpace.VMEM)] * 4,
        out_specs=pl.BlockSpec(memory_space=pltpu.MemorySpace.VMEM),
        # tiny footprint (tens of KB); safely under scoped limits on v5e/v6e/v7x
        compiler_params=pltpu.CompilerParams(vmem_limit_bytes=32 * 1024 * 1024),
    )(x_tm, h0_pad, params["wslab"], params["bslab"])
    return out[:B, 0]   # torch.flatten of the (B, 1) result


def init_params(key, input_size, hidden_size, num_layers):
    """PyTorch-style uniform(-1/sqrt(fan), 1/sqrt(fan)) init, packed into two slabs."""
    I, H, L = input_size, hidden_size, num_layers
    assert H <= 128 and I <= 128, "slab packing assumes H, I fit one lane tile"
    ks = jax.random.split(key, 4 * L + 4)
    k_rnn = 1.0 / jnp.sqrt(H)

    w_ih, w_hh, b_ih, b_hh = [], [], [], []
    for l in range(L):
        in_l = I if l == 0 else H
        w_ih.append(jax.random.uniform(ks[4 * l + 0], (H, in_l), jnp.float32, -k_rnn, k_rnn))
        w_hh.append(jax.random.uniform(ks[4 * l + 1], (H, H), jnp.float32, -k_rnn, k_rnn))
        b_ih.append(jax.random.uniform(ks[4 * l + 2], (H,), jnp.float32, -k_rnn, k_rnn))
        b_hh.append(jax.random.uniform(ks[4 * l + 3], (H,), jnp.float32, -k_rnn, k_rnn))

    # fc layers: spec hard-codes fc1 in_features=8 (== hidden_size for this config)
    k1 = 1.0 / jnp.sqrt(float(H))
    k2 = 1.0 / jnp.sqrt(64.0)
    w1 = jax.random.uniform(ks[-4], (64, H), jnp.float32, -k1, k1)    # torch (out, in)
    b1 = jax.random.uniform(ks[-3], (64,), jnp.float32, -k1, k1)
    w2 = jax.random.uniform(ks[-2], (1, 64), jnp.float32, -k2, k2)
    b2 = jax.random.uniform(ks[-1], (1,), jnp.float32, -k2, k2)

    # ---- packed bf16 weight slab (16-row-aligned blocks, 128 lanes wide) ----
    offs, rows = _slab_layout(I, H, L)
    wslab = jnp.zeros((rows, 128), jnp.float32)
    wslab = wslab.at[offs["wih0"]:offs["wih0"] + I, 0:H].set(w_ih[0].T)
    wslab = wslab.at[offs["whh0"]:offs["whh0"] + H, 0:H].set(w_hh[0].T)
    for l in range(1, L):
        o = offs[f"wih{l}"]; wslab = wslab.at[o:o + H, 0:H].set(w_ih[l].T)
        o = offs[f"whh{l}"]; wslab = wslab.at[o:o + H, 0:H].set(w_hh[l].T)
    o = offs["w1"]; wslab = wslab.at[o:o + H, 0:64].set(w1.T)
    o = offs["w2"]; wslab = wslab.at[o:o + 64, 0:1].set(w2.T)   # fc2 lane-padded to 128 cols
    wslab = wslab.astype(jnp.bfloat16)

    # ---- packed f32 bias slab: row 0 = b0, rows 1..L-1 = layer biases, row L = b1, L+1 = b2
    brows = max(8, ((L + 2 + 7) // 8) * 8)
    bslab = jnp.zeros((brows, 128), jnp.float32)
    bslab = bslab.at[0, 0:H].set(b_ih[0] + b_hh[0])
    for l in range(1, L):
        bslab = bslab.at[l, 0:H].set(b_ih[l] + b_hh[l])
    bslab = bslab.at[L, 0:64].set(b1)
    bslab = bslab.at[L + 1, 0].set(b2[0])

    return dict(wslab=wslab, bslab=bslab,
                # raw weights for the pure-JAX reference
                w_ih=w_ih, w_hh=w_hh, b_ih=b_ih, b_hh=b_hh,
                w1=w1, b1=b1, w2=w2, b2=b2)


def rnn_model_forward_ref(x, h0, params):
    """Pure-JAX f32 reference of the same math (sanity check)."""
    B, T, I = x.shape
    L, _, H = h0.shape
    h = [h0[l] for l in range(L)]
    for t in range(T):
        inp = x[:, t, :]
        for l in range(L):
            g = (inp @ params["w_ih"][l].T + params["b_ih"][l]
                 + h[l] @ params["w_hh"][l].T + params["b_hh"][l])
            h[l] = jnp.tanh(g)
            inp = h[l]
    last = h[L - 1]
    z1 = jnp.maximum(last @ params["w1"].T + params["b1"], 0.0)
    z2 = z1 @ params["w2"].T + params["b2"]
    return z2.reshape(-1)


if __name__ == "__main__":
    input_size, hidden_size, num_layers = 4, 8, 2   # hidden_size=8 matches fc1 in_features=8
    B, T = 2, 8

    key = jax.random.PRNGKey(0)
    kx, kh, kp = jax.random.split(key, 3)
    x = jax.random.normal(kx, (B, T, input_size), jnp.float32)
    h0 = jax.random.normal(kh, (num_layers, B, hidden_size), jnp.float32)
    params = init_params(kp, input_size, hidden_size, num_layers)

    out = jax.block_until_ready(rnn_model_forward(x, h0, params))
    ref = rnn_model_forward_ref(x, h0, params)

    assert out.shape == (B,)
    # bf16 MXU operands through T=8 recurrent tanh steps -> loosened (but meaningful) tolerance
    assert jnp.allclose(out, ref, rtol=1e-2, atol=1e-2), (out, ref)

    print("KERNEL_OK")
</pallas_src>

<mosaic_0001>
module attributes {stable_mosaic.version = 11 : i64} {
  func.func @rnn_forward_kernel(%arg0: memref<64x4xbf16, #tpu.memory_space<vmem>>, %arg1: memref<2x8x8xf32, #tpu.memory_space<vmem>>, %arg2: memref<144x128xbf16, #tpu.memory_space<vmem>>, %arg3: memref<8x128xf32, #tpu.memory_space<vmem>>, %arg4: memref<8x128xf32, #tpu.memory_space<vmem>>) attributes {dimension_semantics = [], scalar_prefetch = 0 : i64, scratch_operands = 0 : i64, tpu.core_type = #tpu.core_type<tc>} {
    %c0 = arith.constant 0 : index
    %c0_0 = arith.constant 0 : index
    %0 = vector.load %arg2[%c0, %c0_0] : memref<144x128xbf16, #tpu.memory_space<vmem>>, vector<144x128xbf16>
    %c0_1 = arith.constant 0 : index
    %c0_2 = arith.constant 0 : index
    %1 = vector.load %arg3[%c0_1, %c0_2] : memref<8x128xf32, #tpu.memory_space<vmem>>, vector<8x128xf32>
    %2 = vector.extract_strided_slice %0 {offsets = [0, 0], sizes = [4, 8], strides = [1, 1]} : vector<144x128xbf16> to vector<4x8xbf16>
    %3 = vector.extract_strided_slice %0 {offsets = [16, 0], sizes = [8, 8], strides = [1, 1]} : vector<144x128xbf16> to vector<8x8xbf16>
    %4 = vector.extract_strided_slice %1 {offsets = [0, 0], sizes = [1, 8], strides = [1, 1]} : vector<8x128xf32> to vector<1x8xf32>
    %5 = vector.extract_strided_slice %0 {offsets = [32, 0], sizes = [8, 8], strides = [1, 1]} : vector<144x128xbf16> to vector<8x8xbf16>
    %6 = vector.extract_strided_slice %0 {offsets = [48, 0], sizes = [8, 8], strides = [1, 1]} : vector<144x128xbf16> to vector<8x8xbf16>
    %7 = vector.extract_strided_slice %1 {offsets = [1, 0], sizes = [1, 8], strides = [1, 1]} : vector<8x128xf32> to vector<1x8xf32>
    %8 = vector.extract_strided_slice %0 {offsets = [64, 0], sizes = [8, 64], strides = [1, 1]} : vector<144x128xbf16> to vector<8x64xbf16>
    %9 = vector.extract_strided_slice %0 {offsets = [80, 0], sizes = [64, 128], strides = [1, 1]} : vector<144x128xbf16> to vector<64x128xbf16>
    %10 = vector.extract_strided_slice %1 {offsets = [2, 0], sizes = [1, 64], strides = [1, 1]} : vector<8x128xf32> to vector<1x64xf32>
    %11 = vector.extract_strided_slice %1 {offsets = [3, 0], sizes = [1, 128], strides = [1, 1]} : vector<8x128xf32> to vector<1x128xf32>
    %c0_3 = arith.constant 0 : index
    %c0_4 = arith.constant 0 : index
    %12 = vector.load %arg0[%c0_3, %c0_4] : memref<64x4xbf16, #tpu.memory_space<vmem>>, vector<64x4xbf16>
    %cst = arith.constant dense<0.000000e+00> : vector<64x8xf32>
    %13 = tpu.matmul %12, %2, %cst {dimension_numbers = #tpu.dot_dimension_numbers<[1], [0], [0], [1], [0, 0, 1, 1], [], []>} : vector<64x4xbf16>, vector<4x8xbf16>, vector<64x8xf32> -> vector<64x8xf32>
    %14 = vector.broadcast %4 : vector<1x8xf32> to vector<64x8xf32>
    %15 = arith.addf %13, %14 : vector<64x8xf32>
    %c0_5 = arith.constant 0 : index
    %c0_6 = arith.constant 0 : index
    %c0_7 = arith.constant 0 : index
    %16 = vector.load %arg1[%c0_5, %c0_6, %c0_7] : memref<2x8x8xf32, #tpu.memory_space<vmem>>, vector<1x8x8xf32>
    %17 = vector.shape_cast %16 : vector<1x8x8xf32> to vector<8x8xf32>
    %c1 = arith.constant 1 : index
    %c0_8 = arith.constant 0 : index
    %c0_9 = arith.constant 0 : index
    %18 = vector.load %arg1[%c1, %c0_8, %c0_9] : memref<2x8x8xf32, #tpu.memory_space<vmem>>, vector<1x8x8xf32>
    %19 = vector.shape_cast %18 : vector<1x8x8xf32> to vector<8x8xf32>
    %20 = vector.extract_strided_slice %15 {offsets = [0, 0], sizes = [8, 8], strides = [1, 1]} : vector<64x8xf32> to vector<8x8xf32>
    %21 = arith.truncf %17 : vector<8x8xf32> to vector<8x8xbf16>
    %cst_10 = arith.constant dense<0.000000e+00> : vector<8x8xf32>
    %22 = tpu.matmul %21, %3, %cst_10 {dimension_numbers = #tpu.dot_dimension_numbers<[1], [0], [0], [1], [0, 0, 1, 1], [], []>} : vector<8x8xbf16>, vector<8x8xbf16>, vector<8x8xf32> -> vector<8x8xf32>
    %23 = arith.addf %20, %22 : vector<8x8xf32>
    %24 = math.tanh %23 : vector<8x8xf32>
    %25 = arith.truncf %24 : vector<8x8xf32> to vector<8x8xbf16>
    %cst_11 = arith.constant dense<0.000000e+00> : vector<8x8xf32>
    %26 = tpu.matmul %25, %5, %cst_11 {dimension_numbers = #tpu.dot_dimension_numbers<[1], [0], [0], [1], [0, 0, 1, 1], [], []>} : vector<8x8xbf16>, vector<8x8xbf16>, vector<8x8xf32> -> vector<8x8xf32>
    %27 = arith.truncf %19 : vector<8x8xf32> to vector<8x8xbf16>
    %cst_12 = arith.constant dense<0.000000e+00> : vector<8x8xf32>
    %28 = tpu.matmul %27, %6, %cst_12 {dimension_numbers = #tpu.dot_dimension_numbers<[1], [0], [0], [1], [0, 0, 1, 1], [], []>} : vector<8x8xbf16>, vector<8x8xbf16>, vector<8x8xf32> -> vector<8x8xf32>
    %29 = arith.addf %26, %28 : vector<8x8xf32>
    %30 = vector.broadcast %7 : vector<1x8xf32> to vector<8x8xf32>
    %31 = arith.addf %29, %30 : vector<8x8xf32>
    %32 = math.tanh %31 : vector<8x8xf32>
    %33 = vector.extract_strided_slice %15 {offsets = [8, 0], sizes = [8, 8], strides = [1, 1]} : vector<64x8xf32> to vector<8x8xf32>
    %34 = arith.truncf %24 : vector<8x8xf32> to vector<8x8xbf16>
    %cst_13 = arith.constant dense<0.000000e+00> : vector<8x8xf32>
    %35 = tpu.matmul %34, %3, %cst_13 {dimension_numbers = #tpu.dot_dimension_numbers<[1], [0], [0], [1], [0, 0, 1, 1], [], []>} : vector<8x8xbf16>, vector<8x8xbf16>, vector<8x8xf32> -> vector<8x8xf32>
    %36 = arith.addf %33, %35 : vector<8x8xf32>
    %37 = math.tanh %36 : vector<8x8xf32>
    %38 = arith.truncf %37 : vector<8x8xf32> to vector<8x8xbf16>
    %cst_14 = arith.constant dense<0.000000e+00> : vector<8x8xf32>
    %39 = tpu.matmul %38, %5, %cst_14 {dimension_numbers = #tpu.dot_dimension_numbers<[1], [0], [0], [1], [0, 0, 1, 1], [], []>} : vector<8x8xbf16>, vector<8x8xbf16>, vector<8x8xf32> -> vector<8x8xf32>
    %40 = arith.truncf %32 : vector<8x8xf32> to vector<8x8xbf16>
    %cst_15 = arith.constant dense<0.000000e+00> : vector<8x8xf32>
    %41 = tpu.matmul %40, %6, %cst_15 {dimension_numbers = #tpu.dot_dimension_numbers<[1], [0], [0], [1], [0, 0, 1, 1], [], []>} : vector<8x8xbf16>, vector<8x8xbf16>, vector<8x8xf32> -> vector<8x8xf32>
    %42 = arith.addf %39, %41 : vector<8x8xf32>
    %43 = vector.broadcast %7 : vector<1x8xf32> to vector<8x8xf32>
    %44 = arith.addf %42, %43 : vector<8x8xf32>
    %45 = math.tanh %44 : vector<8x8xf32>
    %46 = vector.extract_strided_slice %15 {offsets = [16, 0], sizes = [8, 8], strides = [1, 1]} : vector<64x8xf32> to vector<8x8xf32>
    %47 = arith.truncf %37 : vector<8x8xf32> to vector<8x8xbf16>
    %cst_16 = arith.constant dense<0.000000e+00> : vector<8x8xf32>
    %48 = tpu.matmul %47, %3, %cst_16 {dimension_numbers = #tpu.dot_dimension_numbers<[1], [0], [0], [1], [0, 0, 1, 1], [], []>} : vector<8x8xbf16>, vector<8x8xbf16>, vector<8x8xf32> -> vector<8x8xf32>
    %49 = arith.addf %46, %48 : vector<8x8xf32>
    %50 = math.tanh %49 : vector<8x8xf32>
    %51 = arith.truncf %50 : vector<8x8xf32> to vector<8x8xbf16>
    %cst_17 = arith.constant dense<0.000000e+00> : vector<8x8xf32>
    %52 = tpu.matmul %51, %5, %cst_17 {dimension_numbers = #tpu.dot_dimension_numbers<[1], [0], [0], [1], [0, 0, 1, 1], [], []>} : vector<8x8xbf16>, vector<8x8xbf16>, vector<8x8xf32> -> vector<8x8xf32>
    %53 = arith.truncf %45 : vector<8x8xf32> to vector<8x8xbf16>
    %cst_18 = arith.constant dense<0.000000e+00> : vector<8x8xf32>
    %54 = tpu.matmul %53, %6, %cst_18 {dimension_numbers = #tpu.dot_dimension_numbers<[1], [0], [0], [1], [0, 0, 1, 1], [], []>} : vector<8x8xbf16>, vector<8x8xbf16>, vector<8x8xf32> -> vector<8x8xf32>
    %55 = arith.addf %52, %54 : vector<8x8xf32>
    %56 = vector.broadcast %7 : vector<1x8xf32> to vector<8x8xf32>
    %57 = arith.addf %55, %56 : vector<8x8xf32>
    %58 = math.tanh %57 : vector<8x8xf32>
    %59 = vector.extract_strided_slice %15 {offsets = [24, 0], sizes = [8, 8], strides = [1, 1]} : vector<64x8xf32> to vector<8x8xf32>
    %60 = arith.truncf %50 : vector<8x8xf32> to vector<8x8xbf16>
    %cst_19 = arith.constant dense<0.000000e+00> : vector<8x8xf32>
    %61 = tpu.matmul %60, %3, %cst_19 {dimension_numbers = #tpu.dot_dimension_numbers<[1], [0], [0], [1], [0, 0, 1, 1], [], []>} : vector<8x8xbf16>, vector<8x8xbf16>, vector<8x8xf32> -> vector<8x8xf32>
    %62 = arith.addf %59, %61 : vector<8x8xf32>
    %63 = math.tanh %62 : vector<8x8xf32>
    %64 = arith.truncf %63 : vector<8x8xf32> to vector<8x8xbf16>
    %cst_20 = arith.constant dense<0.000000e+00> : vector<8x8xf32>
    %65 = tpu.matmul %64, %5, %cst_20 {dimension_numbers = #tpu.dot_dimension_numbers<[1], [0], [0], [1], [0, 0, 1, 1], [], []>} : vector<8x8xbf16>, vector<8x8xbf16>, vector<8x8xf32> -> vector<8x8xf32>
    %66 = arith.truncf %58 : vector<8x8xf32> to vector<8x8xbf16>
    %cst_21 = arith.constant dense<0.000000e+00> : vector<8x8xf32>
    %67 = tpu.matmul %66, %6, %cst_21 {dimension_numbers = #tpu.dot_dimension_numbers<[1], [0], [0], [1], [0, 0, 1, 1], [], []>} : vector<8x8xbf16>, vector<8x8xbf16>, vector<8x8xf32> -> vector<8x8xf32>
    %68 = arith.addf %65, %67 : vector<8x8xf32>
    %69 = vector.broadcast %7 : vector<1x8xf32> to vector<8x8xf32>
    %70 = arith.addf %68, %69 : vector<8x8xf32>
    %71 = math.tanh %70 : vector<8x8xf32>
    %72 = vector.extract_strided_slice %15 {offsets = [32, 0], sizes = [8, 8], strides = [1, 1]} : vector<64x8xf32> to vector<8x8xf32>
    %73 = arith.truncf %63 : vector<8x8xf32> to vector<8x8xbf16>
    %cst_22 = arith.constant dense<0.000000e+00> : vector<8x8xf32>
    %74 = tpu.matmul %73, %3, %cst_22 {dimension_numbers = #tpu.dot_dimension_numbers<[1], [0], [0], [1], [0, 0, 1, 1], [], []>} : vector<8x8xbf16>, vector<8x8xbf16>, vector<8x8xf32> -> vector<8x8xf32>
    %75 = arith.addf %72, %74 : vector<8x8xf32>
    %76 = math.tanh %75 : vector<8x8xf32>
    %77 = arith.truncf %76 : vector<8x8xf32> to vector<8x8xbf16>
    %cst_23 = arith.constant dense<0.000000e+00> : vector<8x8xf32>
    %78 = tpu.matmul %77, %5, %cst_23 {dimension_numbers = #tpu.dot_dimension_numbers<[1], [0], [0], [1], [0, 0, 1, 1], [], []>} : vector<8x8xbf16>, vector<8x8xbf16>, vector<8x8xf32> -> vector<8x8xf32>
    %79 = arith.truncf %71 : vector<8x8xf32> to vector<8x8xbf16>
    %cst_24 = arith.constant dense<0.000000e+00> : vector<8x8xf32>
    %80 = tpu.matmul %79, %6, %cst_24 {dimension_numbers = #tpu.dot_dimension_numbers<[1], [0], [0], [1], [0, 0, 1, 1], [], []>} : vector<8x8xbf16>, vector<8x8xbf16>, vector<8x8xf32> -> vector<8x8xf32>
    %81 = arith.addf %78, %80 : vector<8x8xf32>
    %82 = vector.broadcast %7 : vector<1x8xf32> to vector<8x8xf32>
    %83 = arith.addf %81, %82 : vector<8x8xf32>
    %84 = math.tanh %83 : vector<8x8xf32>
    %85 = vector.extract_strided_slice %15 {offsets = [40, 0], sizes = [8, 8], strides = [1, 1]} : vector<64x8xf32> to vector<8x8xf32>
    %86 = arith.truncf %76 : vector<8x8xf32> to vector<8x8xbf16>
    %cst_25 = arith.constant dense<0.000000e+00> : vector<8x8xf32>
    %87 = tpu.matmul %86, %3, %cst_25 {dimension_numbers = #tpu.dot_dimension_numbers<[1], [0], [0], [1], [0, 0, 1, 1], [], []>} : vector<8x8xbf16>, vector<8x8xbf16>, vector<8x8xf32> -> vector<8x8xf32>
    %88 = arith.addf %85, %87 : vector<8x8xf32>
    %89 = math.tanh %88 : vector<8x8xf32>
    %90 = arith.truncf %89 : vector<8x8xf32> to vector<8x8xbf16>
    %cst_26 = arith.constant dense<0.000000e+00> : vector<8x8xf32>
    %91 = tpu.matmul %90, %5, %cst_26 {dimension_numbers = #tpu.dot_dimension_numbers<[1], [0], [0], [1], [0, 0, 1, 1], [], []>} : vector<8x8xbf16>, vector<8x8xbf16>, vector<8x8xf32> -> vector<8x8xf32>
    %92 = arith.truncf %84 : vector<8x8xf32> to vector<8x8xbf16>
    %cst_27 = arith.constant dense<0.000000e+00> : vector<8x8xf32>
    %93 = tpu.matmul %92, %6, %cst_27 {dimension_numbers = #tpu.dot_dimension_numbers<[1], [0], [0], [1], [0, 0, 1, 1], [], []>} : vector<8x8xbf16>, vector<8x8xbf16>, vector<8x8xf32> -> vector<8x8xf32>
    %94 = arith.addf %91, %93 : vector<8x8xf32>
    %95 = vector.broadcast %7 : vector<1x8xf32> to vector<8x8xf32>
    %96 = arith.addf %94, %95 : vector<8x8xf32>
    %97 = math.tanh %96 : vector<8x8xf32>
    %98 = vector.extract_strided_slice %15 {offsets = [48, 0], sizes = [8, 8], strides = [1, 1]} : vector<64x8xf32> to vector<8x8xf32>
    %99 = arith.truncf %89 : vector<8x8xf32> to vector<8x8xbf16>
    %cst_28 = arith.constant dense<0.000000e+00> : vector<8x8xf32>
    %100 = tpu.matmul %99, %3, %cst_28 {dimension_numbers = #tpu.dot_dimension_numbers<[1], [0], [0], [1], [0, 0, 1, 1], [], []>} : vector<8x8xbf16>, vector<8x8xbf16>, vector<8x8xf32> -> vector<8x8xf32>
    %101 = arith.addf %98, %100 : vector<8x8xf32>
    %102 = math.tanh %101 : vector<8x8xf32>
    %103 = arith.truncf %102 : vector<8x8xf32> to vector<8x8xbf16>
    %cst_29 = arith.constant dense<0.000000e+00> : vector<8x8xf32>
    %104 = tpu.matmul %103, %5, %cst_29 {dimension_numbers = #tpu.dot_dimension_numbers<[1], [0], [0], [1], [0, 0, 1, 1], [], []>} : vector<8x8xbf16>, vector<8x8xbf16>, vector<8x8xf32> -> vector<8x8xf32>
    %105 = arith.truncf %97 : vector<8x8xf32> to vector<8x8xbf16>
    %cst_30 = arith.constant dense<0.000000e+00> : vector<8x8xf32>
    %106 = tpu.matmul %105, %6, %cst_30 {dimension_numbers = #tpu.dot_dimension_numbers<[1], [0], [0], [1], [0, 0, 1, 1], [], []>} : vector<8x8xbf16>, vector<8x8xbf16>, vector<8x8xf32> -> vector<8x8xf32>
    %107 = arith.addf %104, %106 : vector<8x8xf32>
    %108 = vector.broadcast %7 : vector<1x8xf32> to vector<8x8xf32>
    %109 = arith.addf %107, %108 : vector<8x8xf32>
    %110 = math.tanh %109 : vector<8x8xf32>
    %111 = vector.extract_strided_slice %15 {offsets = [56, 0], sizes = [8, 8], strides = [1, 1]} : vector<64x8xf32> to vector<8x8xf32>
    %112 = arith.truncf %102 : vector<8x8xf32> to vector<8x8xbf16>
    %cst_31 = arith.constant dense<0.000000e+00> : vector<8x8xf32>
    %113 = tpu.matmul %112, %3, %cst_31 {dimension_numbers = #tpu.dot_dimension_numbers<[1], [0], [0], [1], [0, 0, 1, 1], [], []>} : vector<8x8xbf16>, vector<8x8xbf16>, vector<8x8xf32> -> vector<8x8xf32>
    %114 = arith.addf %111, %113 : vector<8x8xf32>
    %115 = math.tanh %114 : vector<8x8xf32>
    %116 = arith.truncf %115 : vector<8x8xf32> to vector<8x8xbf16>
    %cst_32 = arith.constant dense<0.000000e+00> : vector<8x8xf32>
    %117 = tpu.matmul %116, %5, %cst_32 {dimension_numbers = #tpu.dot_dimension_numbers<[1], [0], [0], [1], [0, 0, 1, 1], [], []>} : vector<8x8xbf16>, vector<8x8xbf16>, vector<8x8xf32> -> vector<8x8xf32>
    %118 = arith.truncf %110 : vector<8x8xf32> to vector<8x8xbf16>
    %cst_33 = arith.constant dense<0.000000e+00> : vector<8x8xf32>
    %119 = tpu.matmul %118, %6, %cst_33 {dimension_numbers = #tpu.dot_dimension_numbers<[1], [0], [0], [1], [0, 0, 1, 1], [], []>} : vector<8x8xbf16>, vector<8x8xbf16>, vector<8x8xf32> -> vector<8x8xf32>
    %120 = arith.addf %117, %119 : vector<8x8xf32>
    %121 = vector.broadcast %7 : vector<1x8xf32> to vector<8x8xf32>
    %122 = arith.addf %120, %121 : vector<8x8xf32>
    %123 = math.tanh %122 : vector<8x8xf32>
    %124 = arith.truncf %123 : vector<8x8xf32> to vector<8x8xbf16>
    %cst_34 = arith.constant dense<0.000000e+00> : vector<8x64xf32>
    %125 = tpu.matmul %124, %8, %cst_34 {dimension_numbers = #tpu.dot_dimension_numbers<[1], [0], [0], [1], [0, 0, 1, 1], [], []>} : vector<8x8xbf16>, vector<8x64xbf16>, vector<8x64xf32> -> vector<8x64xf32>
    %126 = vector.broadcast %10 : vector<1x64xf32> to vector<8x64xf32>
    %127 = arith.addf %125, %126 : vector<8x64xf32>
    %cst_35 = arith.constant 0.000000e+00 : f32
    %128 = vector.broadcast %cst_35 : f32 to vector<8x64xf32>
    %129 = arith.maximumf %127, %128 : vector<8x64xf32>
    %130 = arith.truncf %129 : vector<8x64xf32> to vector<8x64xbf16>
    %cst_36 = arith.constant dense<0.000000e+00> : vector<8x128xf32>
    %131 = tpu.matmul %130, %9, %cst_36 {dimension_numbers = #tpu.dot_dimension_numbers<[1], [0], [0], [1], [0, 0, 1, 1], [], []>} : vector<8x64xbf16>, vector<64x128xbf16>, vector<8x128xf32> -> vector<8x128xf32>
    %132 = vector.broadcast %11 : vector<1x128xf32> to vector<8x128xf32>
    %133 = arith.addf %131, %132 : vector<8x128xf32>
    %c0_37 = arith.constant 0 : index
    %c0_38 = arith.constant 0 : index
    %134 = vector.load %arg4[%c0_37, %c0_38] : memref<8x128xf32, #tpu.memory_space<vmem>>, vector<8x128xf32>
    tpu.vector_store %arg4[%c0_37, %c0_38], %133 {strides = array<i32>} : memref<8x128xf32, #tpu.memory_space<vmem>>, vector<8x128xf32>,
    return
  }
}

</mosaic_0001>

<llo_original>
// kernel: tpu_custom_call.1
$region0: #{tpu_custom_call.1}
  #allocation0 [shape = 'u32[]', space=smem, size = 0x4, offset = 0x4, fixed_abs, tag = 'smem constant byte address 0x4 - core index']
  #allocation1 [shape = 'u32[144,128]{1,0:T(1,128)}', space=vmem, size = 0x12000, scoped, tag = 'internal scratch']
  %s0 = inlined_call_operand.vmem [shape: bf16[64,4], index: 0, kind: input, shape index: {}]
  %s1 = inlined_call_operand.vmem [shape: f32[2,8,8], index: 1, kind: input, shape index: {}]
  %s2 = inlined_call_operand.hbm [shape: bf16[144,128], index: 2, kind: input, shape index: {}]
  %s3 = inlined_call_operand.vmem [shape: f32[8,128], index: 3, kind: input, shape index: {}]
  %s4 = inlined_call_operand.hbm [shape: f32[8,128], index: 4, kind: output, shape index: {}]
  %s5 = sld [smem:[#allocation0]]
  $region30: #{tpu_custom_call.1} parent=0
    _
  %s7 = ssub.s32 1, %s5
  %s8 = scalar_select 0, %s7, %s5
  $region1: #{tpu_custom_call.1} parent=0
    #allocation2 [shape = 'u8[36864]{0}', space=vmem, size = 0x9000, scoped, tag = 'input window, operand 2, single buffered']
    #allocation3 [shape = 's32[1]{0}', space=sflag, size = 0x4, scoped, tag = 'scoped memory for tpu_custom_call.1']
    #allocation4 [shape = 's32[1]{0}', space=sflag, size = 0x4, scoped, tag = 'scoped memory for tpu_custom_call.1']
    #allocation5 [shape = 'u8[4096]{0}', space=vmem, size = 0x1000, scoped, tag = 'output window, operand 0, single buffered']
    %9 = vsyncpa [#allocation3], 0
    %10 = vsyncpa [#allocation4], 0
    // Predicated region
    $region2: #{tpu_custom_call.1} parent=1 // pred_check
      _
    $region3: #{tpu_custom_call.1} parent=1 // pred_check_branch
      %12 = sbr.rel (0) target = $region5
    $region4: #{tpu_custom_call.1} parent=1 // pred_region
      _
    $region5: #{tpu_custom_call.1} parent=1 // pred_fallthru
      _
    // Predicated region
    $region6: #{tpu_custom_call.1} parent=1 // pred_check
      _
    $region7: #{tpu_custom_call.1} parent=1 // pred_check_branch
      %14 = sbr.rel (0) target = $region9
    $region8: #{tpu_custom_call.1} parent=1 // pred_region
      _
    $region9: #{tpu_custom_call.1} parent=1 // pred_fallthru
      _
    // Predicated region
    $region10: #{tpu_custom_call.1} parent=1 // pred_check
      _
    $region11: #{tpu_custom_call.1} parent=1 // pred_check_branch
      %16 = sbr.rel (0) target = $region13
    $region12: #{tpu_custom_call.1} parent=1 // pred_region
      %s18 = ssub.s32 1152, 1152
      %19 = vsyncadd [#allocation3], %s18
      %s20 = sshll.u32 [#allocation2], 4
      %s21 = int_to_ptr.vmem [resolvable:$true] %s20
      %26 = dma.hbm_to_vmem [thread:$0]  %s2, 1152, %s21, [#allocation3], 64, 64, 4
    $region13: #{tpu_custom_call.1} parent=1 // pred_fallthru
      _
    // Predicated region
    $region14: #{tpu_custom_call.1} parent=1 // pred_check
      _
    $region15: #{tpu_custom_call.1} parent=1 // pred_check_branch
      %28 = sbr.rel (0) target = $region17
    $region16: #{tpu_custom_call.1} parent=1 // pred_region
      _
    $region17: #{tpu_custom_call.1} parent=1 // pred_fallthru
      _
    // Predicated region
    $region18: #{tpu_custom_call.1} parent=1 // pred_check
      _
    $region19: #{tpu_custom_call.1} parent=1 // pred_check_branch
      %30 = sbr.rel (0) target = $region21
    $region20: #{tpu_custom_call.1} parent=1 // pred_region
      %31 = dma.done [#allocation3], 1152
    $region21: #{tpu_custom_call.1} parent=1 // pred_fallthru
      _
    %v33 = vld [vmem:[#allocation2] sm:$0xf]
    %v34 = vld [vmem:[#allocation2 + $0x8] sm:$0xf]
    %v35 = vld [vmem:[#allocation2 + $0x10] sm:$0xf]
    %v36 = vld [vmem:[#allocation2 + $0x18] sm:$0xf]
    %v37 = vld [vmem:[#allocation2 + $0x20] sm:$0xf]
    %v38 = vld [vmem:[#allocation2 + $0x28] sm:$0xf]
    %v39 = vld [vmem:[#allocation2 + $0x2c] sm:$0xf]
    %v40 = vld [vmem:[#allocation2 + $0x30] sm:$0xf]
    %v41 = vld [vmem:[#allocation2 + $0x34] sm:$0xf]
    %v42 = vld [vmem:[#allocation2 + $0x38] sm:$0xf]
    %v43 = vld [vmem:[#allocation2 + $0x3c] sm:$0xf]
    %v44 = vld [vmem:[#allocation2 + $0x40] sm:$0xf]
    %v45 = vld [vmem:[#allocation2 + $0x44] sm:$0xf]
    %v46 = vld [vmem:[%s3] sm:$0xff]
    %v47 = vld [vmem:[%s0] sm:$0xf]
    %v48 = vld [vmem:[%s0 + $0x4] sm:$0xf]
    %v49 = vld [vmem:[%s0 + $0x8] sm:$0xf]
    %v50 = vld [vmem:[%s0 + $0xc] sm:$0xf]
    %v51 = vld [vmem:[%s0 + $0x10] sm:$0xf]
    %v52 = vld [vmem:[%s0 + $0x14] sm:$0xf]
    %v53 = vld [vmem:[%s0 + $0x18] sm:$0xf]
    %v54 = vld [vmem:[%s0 + $0x1c] sm:$0xf]
    %v55 = vlaneseq
    %v56 = vshrl.u32 %v55, 7
    %v57 = vsub.s32 0, %v56
    %v58 = vrot.slane %v46, %v57
    %v67 = vunpack.c.l.b16 %v47
    %v68 = vunpack.c.l.b16 %v48
    %v69 = vunpack.c.l.b16 %v49
    %v70 = vunpack.c.l.b16 %v50
    %v71 = vunpack.c.l.b16 %v51
    %v72 = vunpack.c.l.b16 %v52
    %v73 = vunpack.c.l.b16 %v53
    %v74 = vunpack.c.l.b16 %v54
    %v75 = vpack.c.b16 %v68, %v67
    %v76 = vpack.c.b16 %v70, %v69
    %v77 = vpack.c.b16 %v72, %v71
    %v78 = vpack.c.b16 %v74, %v73
    %vm79 = vcmask 31744
    %v81 = vsel %vm79, %v75, 0
    %v84 = vsel %vm79, %v76, 0
    %v87 = vsel %vm79, %v77, 0
    %v90 = vsel %vm79, %v78, 0
    %vm92 = vcmask 1041408
    %v94 = vsel %vm92, %v33, 0
    %96 = vmatprep.subr.bf16.mxu0 0
    %97 = vmatpush1.bf16.msra.mxu0 0
    %98 = vmatprep.subr.bf16.mxu0 0
    %99 = vmatpush1.bf16.msra.mxu0 0
    %100 = vmatprep.subr.bf16.mxu0 0
    %101 = vmatpush1.bf16.msra.mxu0 0
    %102 = vmatprep.subr.bf16.mxu0 0
    %103 = vmatpush1.bf16.msra.mxu0 0
    %104 = vmatprep.subr.bf16.mxu0 0
    %105 = vmatpush1.bf16.msra.mxu0 0
    %106 = vmatprep.subr.bf16.mxu0 0
    %107 = vmatpush1.bf16.msra.mxu0 0
    %108 = vmatprep.subr.bf16.mxu0 0
    %109 = vmatpush1.bf16.msra.mxu0 0
    %110 = vmatprep.subr.bf16.mxu0 0
    %111 = vmatpush1.bf16.msra.mxu0 %v94
    %112 = vmatprep.subr.bf16.mxu0 0
    %113 = vmatpush2.bf16.msra.mxu0 0
    %114 = vmatprep.subr.bf16.mxu0 0
    %115 = vmatpush2.bf16.msra.mxu0 0
    %116 = vmatprep.subr.bf16.mxu0 0
    %117 = vmatpush2.bf16.msra.mxu0 0
    %118 = vmatprep.subr.bf16.mxu0 0
    %119 = vmatpush2.bf16.msra.mxu0 0
    %120 = vmatprep.subr.bf16.mxu0 0
    %121 = vmatpush2.bf16.msra.mxu0 0
    %122 = vmatprep.subr.bf16.mxu0 0
    %123 = vmatpush2.bf16.msra.mxu0 0
    %124 = vmatprep.subr.bf16.mxu0 0
    %125 = vmatpush2.bf16.msra.mxu0 0
    %126 = vmatprep.subr.bf16.mxu0 0
    %127 = vmatpush2.bf16.msra.mxu0 0
    %128 = vmatprep.mubr.bf16.mxu0 0
    %129 = vmatmul.mubr.bf16.gmra.mxu0 %v81
    %v130 = vpop.f32.mrf.mxu0
    %v131 = vadd.f32 %v58, %v130
    %v132 = vpop.f32.mrf.mxu0
    %v133 = vpop.f32.mrf.mxu0
    %v134 = vadd.f32 %v58, %v133
    %v135 = vpop.f32.mrf.mxu0
    %136 = vmatprep.mubr.bf16.mxu0 0
    %137 = vmatmul.mubr.bf16.gmra.mxu0 %v84
    %v138 = vpop.f32.mrf.mxu0
    %v139 = vadd.f32 %v58, %v138
    %v140 = vpop.f32.mrf.mxu0
    %v141 = vpop.f32.mrf.mxu0
    %v142 = vadd.f32 %v58, %v141
    %v143 = vpop.f32.mrf.mxu0
    %144 = vmatprep.mubr.bf16.mxu0 0
    %145 = vmatmul.mubr.bf16.gmra.mxu0 %v87
    %v146 = vpop.f32.mrf.mxu0
    %v147 = vadd.f32 %v58, %v146
    %v148 = vpop.f32.mrf.mxu0
    %v149 = vpop.f32.mrf.mxu0
    %v150 = vadd.f32 %v58, %v149
    %v151 = vpop.f32.mrf.mxu0
    %152 = vmatprep.mubr.bf16.mxu0 0
    %153 = vmatmul.mubr.bf16.gmra.mxu0 %v90
    %v154 = vpop.f32.mrf.mxu0
    %v155 = vadd.f32 %v58, %v154
    %v156 = vpop.f32.mrf.mxu0
    %v157 = vpop.f32.mrf.mxu0
    %v158 = vadd.f32 %v58, %v157
    %v159 = vpop.f32.mrf.mxu0
    %160 = vdwg.mxu0
    %v161 = vld [vmem:[%s1] sm:$0xff]
    %s162 = scalar_lea.vmem %s1, 8
    %v163 = vld [vmem:[%s162] sm:$0xff]
    %v164 = vpack.c.bf16 %v161, %v161
    %vm165 = vcmask 64512
    %v167 = vsel %vm165, %v164, 0
    %vm169 = vcmask 1043456
    %v171 = vsel %vm169, %v34, 0
    %173 = vmatprep.subr.bf16.mxu0 0
    %174 = vmatpush1.bf16.msra.mxu0 0
    %175 = vmatprep.subr.bf16.mxu0 0
    %176 = vmatpush1.bf16.msra.mxu0 0
    %177 = vmatprep.subr.bf16.mxu0 0
    %178 = vmatpush1.bf16.msra.mxu0 0
    %179 = vmatprep.subr.bf16.mxu0 0
    %180 = vmatpush1.bf16.msra.mxu0 0
    %181 = vmatprep.subr.bf16.mxu0 0
    %182 = vmatpush1.bf16.msra.mxu0 0
    %183 = vmatprep.subr.bf16.mxu0 0
    %184 = vmatpush1.bf16.msra.mxu0 0
    %185 = vmatprep.subr.bf16.mxu0 0
    %186 = vmatpush1.bf16.msra.mxu0 0
    %187 = vmatprep.subr.bf16.mxu0 0
    %188 = vmatpush1.bf16.msra.mxu0 %v171
    %189 = vmatprep.subr.bf16.mxu0 0
    %190 = vmatpush2.bf16.msra.mxu0 0
    %191 = vmatprep.subr.bf16.mxu0 0
    %192 = vmatpush2.bf16.msra.mxu0 0
    %193 = vmatprep.subr.bf16.mxu0 0
    %194 = vmatpush2.bf16.msra.mxu0 0
    %195 = vmatprep.subr.bf16.mxu0 0
    %196 = vmatpush2.bf16.msra.mxu0 0
    %197 = vmatprep.subr.bf16.mxu0 0
    %198 = vmatpush2.bf16.msra.mxu0 0
    %199 = vmatprep.subr.bf16.mxu0 0
    %200 = vmatpush2.bf16.msra.mxu0 0
    %201 = vmatprep.subr.bf16.mxu0 0
    %202 = vmatpush2.bf16.msra.mxu0 0
    %203 = vmatprep.subr.bf16.mxu0 0
    %204 = vmatpush2.bf16.msra.mxu0 0
    %205 = vmatprep.mubr.bf16.mxu0 0
    %206 = vmatmul.mubr.bf16.gmra.mxu0 %v167
    %v207 = vpop.f32.mrf.mxu0
    %v208 = vadd.f32 0.0, %v207
    %v209 = vpop.f32.mrf.mxu0
    %v210 = vpop.f32.mrf.mxu0
    %v211 = vpop.f32.mrf.mxu0
    %212 = vdwg.mxu0
    %v213 = vadd.f32 %v131, %v208
    %v214 = vtanh.pop %v213
    %v215 = vpack.c.bf16 %v214, %v214
    %v216 = vpack.c.bf16 %v163, %v163
    %v218 = vsel %vm165, %v216, 0
    %v221 = vsel %vm169, %v36, 0
    %223 = vmatprep.subr.bf16.mxu0 0
    %224 = vmatpush1.bf16.msra.mxu0 0
    %225 = vmatprep.subr.bf16.mxu0 0
    %226 = vmatpush1.bf16.msra.mxu0 0
    %227 = vmatprep.subr.bf16.mxu0 0
    %228 = vmatpush1.bf16.msra.mxu0 0
    %229 = vmatprep.subr.bf16.mxu0 0
    %230 = vmatpush1.bf16.msra.mxu0 0
    %231 = vmatprep.subr.bf16.mxu0 0
    %232 = vmatpush1.bf16.msra.mxu0 0
    %233 = vmatprep.subr.bf16.mxu0 0
    %234 = vmatpush1.bf16.msra.mxu0 0
    %235 = vmatprep.subr.bf16.mxu0 0
    %236 = vmatpush1.bf16.msra.mxu0 0
    %237 = vmatprep.subr.bf16.mxu0 0
    %238 = vmatpush1.bf16.msra.mxu0 %v221
    %239 = vmatprep.subr.bf16.mxu0 0
    %240 = vmatpush2.bf16.msra.mxu0 0
    %241 = vmatprep.subr.bf16.mxu0 0
    %242 = vmatpush2.bf16.msra.mxu0 0
    %243 = vmatprep.subr.bf16.mxu0 0
    %244 = vmatpush2.bf16.msra.mxu0 0
    %245 = vmatprep.subr.bf16.mxu0 0
    %246 = vmatpush2.bf16.msra.mxu0 0
    %247 = vmatprep.subr.bf16.mxu0 0
    %248 = vmatpush2.bf16.msra.mxu0 0
    %249 = vmatprep.subr.bf16.mxu0 0
    %250 = vmatpush2.bf16.msra.mxu0 0
    %251 = vmatprep.subr.bf16.mxu0 0
    %252 = vmatpush2.bf16.msra.mxu0 0
    %253 = vmatprep.subr.bf16.mxu0 0
    %254 = vmatpush2.bf16.msra.mxu0 0
    %255 = vmatprep.mubr.bf16.mxu0 0
    %256 = vmatmul.mubr.bf16.gmra.mxu0 %v218
    %v257 = vpop.f32.mrf.mxu0
    %v258 = vadd.f32 0.0, %v257
    %v259 = vpop.f32.mrf.mxu0
    %v260 = vpop.f32.mrf.mxu0
    %v261 = vpop.f32.mrf.mxu0
    %262 = vdwg.mxu0
    %v264 = vsel %vm165, %v215, 0
    %v267 = vsel %vm169, %v35, 0
    %269 = vmatprep.subr.bf16.mxu0 0
    %270 = vmatpush1.bf16.msra.mxu0 0
    %271 = vmatprep.subr.bf16.mxu0 0
    %272 = vmatpush1.bf16.msra.mxu0 0
    %273 = vmatprep.subr.bf16.mxu0 0
    %274 = vmatpush1.bf16.msra.mxu0 0
    %275 = vmatprep.subr.bf16.mxu0 0
    %276 = vmatpush1.bf16.msra.mxu0 0
    %277 = vmatprep.subr.bf16.mxu0 0
    %278 = vmatpush1.bf16.msra.mxu0 0
    %279 = vmatprep.subr.bf16.mxu0 0
    %280 = vmatpush1.bf16.msra.mxu0 0
    %281 = vmatprep.subr.bf16.mxu0 0
    %282 = vmatpush1.bf16.msra.mxu0 0
    %283 = vmatprep.subr.bf16.mxu0 0
    %284 = vmatpush1.bf16.msra.mxu0 %v267
    %285 = vmatprep.subr.bf16.mxu0 0
    %286 = vmatpush2.bf16.msra.mxu0 0
    %287 = vmatprep.subr.bf16.mxu0 0
    %288 = vmatpush2.bf16.msra.mxu0 0
    %289 = vmatprep.subr.bf16.mxu0 0
    %290 = vmatpush2.bf16.msra.mxu0 0
    %291 = vmatprep.subr.bf16.mxu0 0
    %292 = vmatpush2.bf16.msra.mxu0 0
    %293 = vmatprep.subr.bf16.mxu0 0
    %294 = vmatpush2.bf16.msra.mxu0 0
    %295 = vmatprep.subr.bf16.mxu0 0
    %296 = vmatpush2.bf16.msra.mxu0 0
    %297 = vmatprep.subr.bf16.mxu0 0
    %298 = vmatpush2.bf16.msra.mxu0 0
    %299 = vmatprep.subr.bf16.mxu0 0
    %300 = vmatpush2.bf16.msra.mxu0 0
    %301 = vmatprep.mubr.bf16.mxu0 0
    %302 = vmatmul.mubr.bf16.gmra.mxu0 %v264
    %v303 = vpop.f32.mrf.mxu0
    %v304 = vadd.f32 %v258, %v303
    %v305 = vpop.f32.mrf.mxu0
    %v306 = vpop.f32.mrf.mxu0
    %v307 = vpop.f32.mrf.mxu0
    %308 = vdwg.mxu0
    %v309 = vlaneseq
    %v310 = vshrl.u32 %v309, 7
    %v311 = vsub.s32 1, %v310
    %v312 = vrot.slane %v46, %v311
    %v313 = vadd.f32 %v304, %v312
    %v314 = vtanh.pop %v313
    %315 = vmatprep.subr.bf16.mxu0 0
    %316 = vmatpush1.bf16.msra.mxu0 0
    %317 = vmatprep.subr.bf16.mxu0 0
    %318 = vmatpush1.bf16.msra.mxu0 0
    %319 = vmatprep.subr.bf16.mxu0 0
    %320 = vmatpush1.bf16.msra.mxu0 0
    %321 = vmatprep.subr.bf16.mxu0 0
    %322 = vmatpush1.bf16.msra.mxu0 0
    %323 = vmatprep.subr.bf16.mxu0 0
    %324 = vmatpush1.bf16.msra.mxu0 0
    %325 = vmatprep.subr.bf16.mxu0 0
    %326 = vmatpush1.bf16.msra.mxu0 0
    %327 = vmatprep.subr.bf16.mxu0 0
    %328 = vmatpush1.bf16.msra.mxu0 0
    %329 = vmatprep.subr.bf16.mxu0 0
    %330 = vmatpush1.bf16.msra.mxu0 %v171
    %331 = vmatprep.subr.bf16.mxu0 0
    %332 = vmatpush2.bf16.msra.mxu0 0
    %333 = vmatprep.subr.bf16.mxu0 0
    %334 = vmatpush2.bf16.msra.mxu0 0
    %335 = vmatprep.subr.bf16.mxu0 0
    %336 = vmatpush2.bf16.msra.mxu0 0
    %337 = vmatprep.subr.bf16.mxu0 0
    %338 = vmatpush2.bf16.msra.mxu0 0
    %339 = vmatprep.subr.bf16.mxu0 0
    %340 = vmatpush2.bf16.msra.mxu0 0
    %341 = vmatprep.subr.bf16.mxu0 0
    %342 = vmatpush2.bf16.msra.mxu0 0
    %343 = vmatprep.subr.bf16.mxu0 0
    %344 = vmatpush2.bf16.msra.mxu0 0
    %345 = vmatprep.subr.bf16.mxu0 0
    %346 = vmatpush2.bf16.msra.mxu0 0
    %347 = vmatprep.mubr.bf16.mxu0 0
    %348 = vmatmul.mubr.bf16.gmra.mxu0 %v264
    %v349 = vpop.f32.mrf.mxu0
    %v350 = vadd.f32 0.0, %v349
    %v351 = vpop.f32.mrf.mxu0
    %v352 = vpop.f32.mrf.mxu0
    %v353 = vpop.f32.mrf.mxu0
    %354 = vdwg.mxu0
    %v355 = vadd.f32 %v134, %v350
    %v356 = vtanh.pop %v355
    %v357 = vpack.c.bf16 %v356, %v356
    %v358 = vpack.c.bf16 %v314, %v314
    %v360 = vsel %vm165, %v358, 0
    %362 = vmatprep.subr.bf16.mxu0 0
    %363 = vmatpush1.bf16.msra.mxu0 0
    %364 = vmatprep.subr.bf16.mxu0 0
    %365 = vmatpush1.bf16.msra.mxu0 0
    %366 = vmatprep.subr.bf16.mxu0 0
    %367 = vmatpush1.bf16.msra.mxu0 0
    %368 = vmatprep.subr.bf16.mxu0 0
    %369 = vmatpush1.bf16.msra.mxu0 0
    %370 = vmatprep.subr.bf16.mxu0 0
    %371 = vmatpush1.bf16.msra.mxu0 0
    %372 = vmatprep.subr.bf16.mxu0 0
    %373 = vmatpush1.bf16.msra.mxu0 0
    %374 = vmatprep.subr.bf16.mxu0 0
    %375 = vmatpush1.bf16.msra.mxu0 0
    %376 = vmatprep.subr.bf16.mxu0 0
    %377 = vmatpush1.bf16.msra.mxu0 %v221
    %378 = vmatprep.subr.bf16.mxu0 0
    %379 = vmatpush2.bf16.msra.mxu0 0
    %380 = vmatprep.subr.bf16.mxu0 0
    %381 = vmatpush2.bf16.msra.mxu0 0
    %382 = vmatprep.subr.bf16.mxu0 0
    %383 = vmatpush2.bf16.msra.mxu0 0
    %384 = vmatprep.subr.bf16.mxu0 0
    %385 = vmatpush2.bf16.msra.mxu0 0
    %386 = vmatprep.subr.bf16.mxu0 0
    %387 = vmatpush2.bf16.msra.mxu0 0
    %388 = vmatprep.subr.bf16.mxu0 0
    %389 = vmatpush2.bf16.msra.mxu0 0
    %390 = vmatprep.subr.bf16.mxu0 0
    %391 = vmatpush2.bf16.msra.mxu0 0
    %392 = vmatprep.subr.bf16.mxu0 0
    %393 = vmatpush2.bf16.msra.mxu0 0
    %394 = vmatprep.mubr.bf16.mxu0 0
    %395 = vmatmul.mubr.bf16.gmra.mxu0 %v360
    %v396 = vpop.f32.mrf.mxu0
    %v397 = vadd.f32 0.0, %v396
    %v398 = vpop.f32.mrf.mxu0
    %v399 = vpop.f32.mrf.mxu0
    %v400 = vpop.f32.mrf.mxu0
    %401 = vdwg.mxu0
    %v403 = vsel %vm165, %v357, 0
    %405 = vmatprep.subr.bf16.mxu0 0
    %406 = vmatpush1.bf16.msra.mxu0 0
    %407 = vmatprep.subr.bf16.mxu0 0
    %408 = vmatpush1.bf16.msra.mxu0 0
    %409 = vmatprep.subr.bf16.mxu0 0
    %410 = vmatpush1.bf16.msra.mxu0 0
    %411 = vmatprep.subr.bf16.mxu0 0
    %412 = vmatpush1.bf16.msra.mxu0 0
    %413 = vmatprep.subr.bf16.mxu0 0
    %414 = vmatpush1.bf16.msra.mxu0 0
    %415 = vmatprep.subr.bf16.mxu0 0
    %416 = vmatpush1.bf16.msra.mxu0 0
    %417 = vmatprep.subr.bf16.mxu0 0
    %418 = vmatpush1.bf16.msra.mxu0 0
    %419 = vmatprep.subr.bf16.mxu0 0
    %420 = vmatpush1.bf16.msra.mxu0 %v267
    %421 = vmatprep.subr.bf16.mxu0 0
    %422 = vmatpush2.bf16.msra.mxu0 0
    %423 = vmatprep.subr.bf16.mxu0 0
    %424 = vmatpush2.bf16.msra.mxu0 0
    %425 = vmatprep.subr.bf16.mxu0 0
    %426 = vmatpush2.bf16.msra.mxu0 0
    %427 = vmatprep.subr.bf16.mxu0 0
    %428 = vmatpush2.bf16.msra.mxu0 0
    %429 = vmatprep.subr.bf16.mxu0 0
    %430 = vmatpush2.bf16.msra.mxu0 0
    %431 = vmatprep.subr.bf16.mxu0 0
    %432 = vmatpush2.bf16.msra.mxu0 0
    %433 = vmatprep.subr.bf16.mxu0 0
    %434 = vmatpush2.bf16.msra.mxu0 0
    %435 = vmatprep.subr.bf16.mxu0 0
    %436 = vmatpush2.bf16.msra.mxu0 0
    %437 = vmatprep.mubr.bf16.mxu0 0
    %438 = vmatmul.mubr.bf16.gmra.mxu0 %v403
    %v439 = vpop.f32.mrf.mxu0
    %v440 = vadd.f32 %v397, %v439
    %v441 = vpop.f32.mrf.mxu0
    %v442 = vpop.f32.mrf.mxu0
    %v443 = vpop.f32.mrf.mxu0
    %444 = vdwg.mxu0
    %v445 = vadd.f32 %v440, %v312
    %v446 = vtanh.pop %v445
    %447 = vmatprep.subr.bf16.mxu0 0
    %448 = vmatpush1.bf16.msra.mxu0 0
    %449 = vmatprep.subr.bf16.mxu0 0
    %450 = vmatpush1.bf16.msra.mxu0 0
    %451 = vmatprep.subr.bf16.mxu0 0
    %452 = vmatpush1.bf16.msra.mxu0 0
    %453 = vmatprep.subr.bf16.mxu0 0
    %454 = vmatpush1.bf16.msra.mxu0 0
    %455 = vmatprep.subr.bf16.mxu0 0
    %456 = vmatpush1.bf16.msra.mxu0 0
    %457 = vmatprep.subr.bf16.mxu0 0
    %458 = vmatpush1.bf16.msra.mxu0 0
    %459 = vmatprep.subr.bf16.mxu0 0
    %460 = vmatpush1.bf16.msra.mxu0 0
    %461 = vmatprep.subr.bf16.mxu0 0
    %462 = vmatpush1.bf16.msra.mxu0 %v171
    %463 = vmatprep.subr.bf16.mxu0 0
    %464 = vmatpush2.bf16.msra.mxu0 0
    %465 = vmatprep.subr.bf16.mxu0 0
    %466 = vmatpush2.bf16.msra.mxu0 0
    %467 = vmatprep.subr.bf16.mxu0 0
    %468 = vmatpush2.bf16.msra.mxu0 0
    %469 = vmatprep.subr.bf16.mxu0 0
    %470 = vmatpush2.bf16.msra.mxu0 0
    %471 = vmatprep.subr.bf16.mxu0 0
    %472 = vmatpush2.bf16.msra.mxu0 0
    %473 = vmatprep.subr.bf16.mxu0 0
    %474 = vmatpush2.bf16.msra.mxu0 0
    %475 = vmatprep.subr.bf16.mxu0 0
    %476 = vmatpush2.bf16.msra.mxu0 0
    %477 = vmatprep.subr.bf16.mxu0 0
    %478 = vmatpush2.bf16.msra.mxu0 0
    %479 = vmatprep.mubr.bf16.mxu0 0
    %480 = vmatmul.mubr.bf16.gmra.mxu0 %v403
    %v481 = vpop.f32.mrf.mxu0
    %v482 = vadd.f32 0.0, %v481
    %v483 = vpop.f32.mrf.mxu0
    %v484 = vpop.f32.mrf.mxu0
    %v485 = vpop.f32.mrf.mxu0
    %486 = vdwg.mxu0
    %v487 = vadd.f32 %v139, %v482
    %v488 = vtanh.pop %v487
    %v489 = vpack.c.bf16 %v488, %v488
    %v490 = vpack.c.bf16 %v446, %v446
    %v492 = vsel %vm165, %v490, 0
    %494 = vmatprep.subr.bf16.mxu0 0
    %495 = vmatpush1.bf16.msra.mxu0 0
    %496 = vmatprep.subr.bf16.mxu0 0
    %497 = vmatpush1.bf16.msra.mxu0 0
    %498 = vmatprep.subr.bf16.mxu0 0
    %499 = vmatpush1.bf16.msra.mxu0 0
    %500 = vmatprep.subr.bf16.mxu0 0
    %501 = vmatpush1.bf16.msra.mxu0 0
    %502 = vmatprep.subr.bf16.mxu0 0
    %503 = vmatpush1.bf16.msra.mxu0 0
    %504 = vmatprep.subr.bf16.mxu0 0
    %505 = vmatpush1.bf16.msra.mxu0 0
    %506 = vmatprep.subr.bf16.mxu0 0
    %507 = vmatpush1.bf16.msra.mxu0 0
    %508 = vmatprep.subr.bf16.mxu0 0
    %509 = vmatpush1.bf16.msra.mxu0 %v221
    %510 = vmatprep.subr.bf16.mxu0 0
    %511 = vmatpush2.bf16.msra.mxu0 0
    %512 = vmatprep.subr.bf16.mxu0 0
    %513 = vmatpush2.bf16.msra.mxu0 0
    %514 = vmatprep.subr.bf16.mxu0 0
    %515 = vmatpush2.bf16.msra.mxu0 0
    %516 = vmatprep.subr.bf16.mxu0 0
    %517 = vmatpush2.bf16.msra.mxu0 0
    %518 = vmatprep.subr.bf16.mxu0 0
    %519 = vmatpush2.bf16.msra.mxu0 0
    %520 = vmatprep.subr.bf16.mxu0 0
    %521 = vmatpush2.bf16.msra.mxu0 0
    %522 = vmatprep.subr.bf16.mxu0 0
    %523 = vmatpush2.bf16.msra.mxu0 0
    %524 = vmatprep.subr.bf16.mxu0 0
    %525 = vmatpush2.bf16.msra.mxu0 0
    %526 = vmatprep.mubr.bf16.mxu0 0
    %527 = vmatmul.mubr.bf16.gmra.mxu0 %v492
    %v528 = vpop.f32.mrf.mxu0
    %v529 = vadd.f32 0.0, %v528
    %v530 = vpop.f32.mrf.mxu0
    %v531 = vpop.f32.mrf.mxu0
    %v532 = vpop.f32.mrf.mxu0
    %533 = vdwg.mxu0
    %v535 = vsel %vm165, %v489, 0
    %537 = vmatprep.subr.bf16.mxu0 0
    %538 = vmatpush1.bf16.msra.mxu0 0
    %539 = vmatprep.subr.bf16.mxu0 0
    %540 = vmatpush1.bf16.msra.mxu0 0
    %541 = vmatprep.subr.bf16.mxu0 0
    %542 = vmatpush1.bf16.msra.mxu0 0
    %543 = vmatprep.subr.bf16.mxu0 0
    %544 = vmatpush1.bf16.msra.mxu0 0
    %545 = vmatprep.subr.bf16.mxu0 0
    %546 = vmatpush1.bf16.msra.mxu0 0
    %547 = vmatprep.subr.bf16.mxu0 0
    %548 = vmatpush1.bf16.msra.mxu0 0
    %549 = vmatprep.subr.bf16.mxu0 0
    %550 = vmatpush1.bf16.msra.mxu0 0
    %551 = vmatprep.subr.bf16.mxu0 0
    %552 = vmatpush1.bf16.msra.mxu0 %v267
    %553 = vmatprep.subr.bf16.mxu0 0
    %554 = vmatpush2.bf16.msra.mxu0 0
    %555 = vmatprep.subr.bf16.mxu0 0
    %556 = vmatpush2.bf16.msra.mxu0 0
    %557 = vmatprep.subr.bf16.mxu0 0
    %558 = vmatpush2.bf16.msra.mxu0 0
    %559 = vmatprep.subr.bf16.mxu0 0
    %560 = vmatpush2.bf16.msra.mxu0 0
    %561 = vmatprep.subr.bf16.mxu0 0
    %562 = vmatpush2.bf16.msra.mxu0 0
    %563 = vmatprep.subr.bf16.mxu0 0
    %564 = vmatpush2.bf16.msra.mxu0 0
    %565 = vmatprep.subr.bf16.mxu0 0
    %566 = vmatpush2.bf16.msra.mxu0 0
    %567 = vmatprep.subr.bf16.mxu0 0
    %568 = vmatpush2.bf16.msra.mxu0 0
    %569 = vmatprep.mubr.bf16.mxu0 0
    %570 = vmatmul.mubr.bf16.gmra.mxu0 %v535
    %v571 = vpop.f32.mrf.mxu0
    %v572 = vadd.f32 %v529, %v571
    %v573 = vpop.f32.mrf.mxu0
    %v574 = vpop.f32.mrf.mxu0
    %v575 = vpop.f32.mrf.mxu0
    %576 = vdwg.mxu0
    %v577 = vadd.f32 %v572, %v312
    %v578 = vtanh.pop %v577
    %579 = vmatprep.subr.bf16.mxu0 0
    %580 = vmatpush1.bf16.msra.mxu0 0
    %581 = vmatprep.subr.bf16.mxu0 0
    %582 = vmatpush1.bf16.msra.mxu0 0
    %583 = vmatprep.subr.bf16.mxu0 0
    %584 = vmatpush1.bf16.msra.mxu0 0
    %585 = vmatprep.subr.bf16.mxu0 0
    %586 = vmatpush1.bf16.msra.mxu0 0
    %587 = vmatprep.subr.bf16.mxu0 0
    %588 = vmatpush1.bf16.msra.mxu0 0
    %589 = vmatprep.subr.bf16.mxu0 0
    %590 = vmatpush1.bf16.msra.mxu0 0
    %591 = vmatprep.subr.bf16.mxu0 0
    %592 = vmatpush1.bf16.msra.mxu0 0
    %593 = vmatprep.subr.bf16.mxu0 0
    %594 = vmatpush1.bf16.msra.mxu0 %v171
    %595 = vmatprep.subr.bf16.mxu0 0
    %596 = vmatpush2.bf16.msra.mxu0 0
    %597 = vmatprep.subr.bf16.mxu0 0
    %598 = vmatpush2.bf16.msra.mxu0 0
    %599 = vmatprep.subr.bf16.mxu0 0
    %600 = vmatpush2.bf16.msra.mxu0 0
    %601 = vmatprep.subr.bf16.mxu0 0
    %602 = vmatpush2.bf16.msra.mxu0 0
    %603 = vmatprep.subr.bf16.mxu0 0
    %604 = vmatpush2.bf16.msra.mxu0 0
    %605 = vmatprep.subr.bf16.mxu0 0
    %606 = vmatpush2.bf16.msra.mxu0 0
    %607 = vmatprep.subr.bf16.mxu0 0
    %608 = vmatpush2.bf16.msra.mxu0 0
    %609 = vmatprep.subr.bf16.mxu0 0
    %610 = vmatpush2.bf16.msra.mxu0 0
    %611 = vmatprep.mubr.bf16.mxu0 0
    %612 = vmatmul.mubr.bf16.gmra.mxu0 %v535
    %v613 = vpop.f32.mrf.mxu0
    %v614 = vadd.f32 0.0, %v613
    %v615 = vpop.f32.mrf.mxu0
    %v616 = vpop.f32.mrf.mxu0
    %v617 = vpop.f32.mrf.mxu0
    %618 = vdwg.mxu0
    %v619 = vadd.f32 %v142, %v614
    %v620 = vtanh.pop %v619
    %v621 = vpack.c.bf16 %v620, %v620
    %v622 = vpack.c.bf16 %v578, %v578
    %v624 = vsel %vm165, %v622, 0
    %626 = vmatprep.subr.bf16.mxu0 0
    %627 = vmatpush1.bf16.msra.mxu0 0
    %628 = vmatprep.subr.bf16.mxu0 0
    %629 = vmatpush1.bf16.msra.mxu0 0
    %630 = vmatprep.subr.bf16.mxu0 0
    %631 = vmatpush1.bf16.msra.mxu0 0
    %632 = vmatprep.subr.bf16.mxu0 0
    %633 = vmatpush1.bf16.msra.mxu0 0
    %634 = vmatprep.subr.bf16.mxu0 0
    %635 = vmatpush1.bf16.msra.mxu0 0
    %636 = vmatprep.subr.bf16.mxu0 0
    %637 = vmatpush1.bf16.msra.mxu0 0
    %638 = vmatprep.subr.bf16.mxu0 0
    %639 = vmatpush1.bf16.msra.mxu0 0
    %640 = vmatprep.subr.bf16.mxu0 0
    %641 = vmatpush1.bf16.msra.mxu0 %v221
    %642 = vmatprep.subr.bf16.mxu0 0
    %643 = vmatpush2.bf16.msra.mxu0 0
    %644 = vmatprep.subr.bf16.mxu0 0
    %645 = vmatpush2.bf16.msra.mxu0 0
    %646 = vmatprep.subr.bf16.mxu0 0
    %647 = vmatpush2.bf16.msra.mxu0 0
    %648 = vmatprep.subr.bf16.mxu0 0
    %649 = vmatpush2.bf16.msra.mxu0 0
    %650 = vmatprep.subr.bf16.mxu0 0
    %651 = vmatpush2.bf16.msra.mxu0 0
    %652 = vmatprep.subr.bf16.mxu0 0
    %653 = vmatpush2.bf16.msra.mxu0 0
    %654 = vmatprep.subr.bf16.mxu0 0
    %655 = vmatpush2.bf16.msra.mxu0 0
    %656 = vmatprep.subr.bf16.mxu0 0
    %657 = vmatpush2.bf16.msra.mxu0 0
    %658 = vmatprep.mubr.bf16.mxu0 0
    %659 = vmatmul.mubr.bf16.gmra.mxu0 %v624
    %v660 = vpop.f32.mrf.mxu0
    %v661 = vadd.f32 0.0, %v660
    %v662 = vpop.f32.mrf.mxu0
    %v663 = vpop.f32.mrf.mxu0
    %v664 = vpop.f32.mrf.mxu0
    %665 = vdwg.mxu0
    %v667 = vsel %vm165, %v621, 0
    %669 = vmatprep.subr.bf16.mxu0 0
    %670 = vmatpush1.bf16.msra.mxu0 0
    %671 = vmatprep.subr.bf16.mxu0 0
    %672 = vmatpush1.bf16.msra.mxu0 0
    %673 = vmatprep.subr.bf16.mxu0 0
    %674 = vmatpush1.bf16.msra.mxu0 0
    %675 = vmatprep.subr.bf16.mxu0 0
    %676 = vmatpush1.bf16.msra.mxu0 0
    %677 = vmatprep.subr.bf16.mxu0 0
    %678 = vmatpush1.bf16.msra.mxu0 0
    %679 = vmatprep.subr.bf16.mxu0 0
    %680 = vmatpush1.bf16.msra.mxu0 0
    %681 = vmatprep.subr.bf16.mxu0 0
    %682 = vmatpush1.bf16.msra.mxu0 0
    %683 = vmatprep.subr.bf16.mxu0 0
    %684 = vmatpush1.bf16.msra.mxu0 %v267
    %685 = vmatprep.subr.bf16.mxu0 0
    %686 = vmatpush2.bf16.msra.mxu0 0
    %687 = vmatprep.subr.bf16.mxu0 0
    %688 = vmatpush2.bf16.msra.mxu0 0
    %689 = vmatprep.subr.bf16.mxu0 0
    %690 = vmatpush2.bf16.msra.mxu0 0
    %691 = vmatprep.subr.bf16.mxu0 0
    %692 = vmatpush2.bf16.msra.mxu0 0
    %693 = vmatprep.subr.bf16.mxu0 0
    %694 = vmatpush2.bf16.msra.mxu0 0
    %695 = vmatprep.subr.bf16.mxu0 0
    %696 = vmatpush2.bf16.msra.mxu0 0
    %697 = vmatprep.subr.bf16.mxu0 0
    %698 = vmatpush2.bf16.msra.mxu0 0
    %699 = vmatprep.subr.bf16.mxu0 0
    %700 = vmatpush2.bf16.msra.mxu0 0
    %701 = vmatprep.mubr.bf16.mxu0 0
    %702 = vmatmul.mubr.bf16.gmra.mxu0 %v667
    %v703 = vpop.f32.mrf.mxu0
    %v704 = vadd.f32 %v661, %v703
    %v705 = vpop.f32.mrf.mxu0
    %v706 = vpop.f32.mrf.mxu0
    %v707 = vpop.f32.mrf.mxu0
    %708 = vdwg.mxu0
    %v709 = vadd.f32 %v704, %v312
    %v710 = vtanh.pop %v709
    %711 = vmatprep.subr.bf16.mxu0 0
    %712 = vmatpush1.bf16.msra.mxu0 0
    %713 = vmatprep.subr.bf16.mxu0 0
    %714 = vmatpush1.bf16.msra.mxu0 0
    %715 = vmatprep.subr.bf16.mxu0 0
    %716 = vmatpush1.bf16.msra.mxu0 0
    %717 = vmatprep.subr.bf16.mxu0 0
    %718 = vmatpush1.bf16.msra.mxu0 0
    %719 = vmatprep.subr.bf16.mxu0 0
    %720 = vmatpush1.bf16.msra.mxu0 0
    %721 = vmatprep.subr.bf16.mxu0 0
    %722 = vmatpush1.bf16.msra.mxu0 0
    %723 = vmatprep.subr.bf16.mxu0 0
    %724 = vmatpush1.bf16.msra.mxu0 0
    %725 = vmatprep.subr.bf16.mxu0 0
    %726 = vmatpush1.bf16.msra.mxu0 %v171
    %727 = vmatprep.subr.bf16.mxu0 0
    %728 = vmatpush2.bf16.msra.mxu0 0
    %729 = vmatprep.subr.bf16.mxu0 0
    %730 = vmatpush2.bf16.msra.mxu0 0
    %731 = vmatprep.subr.bf16.mxu0 0
    %732 = vmatpush2.bf16.msra.mxu0 0
    %733 = vmatprep.subr.bf16.mxu0 0
    %734 = vmatpush2.bf16.msra.mxu0 0
    %735 = vmatprep.subr.bf16.mxu0 0
    %736 = vmatpush2.bf16.msra.mxu0 0
    %737 = vmatprep.subr.bf16.mxu0 0
    %738 = vmatpush2.bf16.msra.mxu0 0
    %739 = vmatprep.subr.bf16.mxu0 0
    %740 = vmatpush2.bf16.msra.mxu0 0
    %741 = vmatprep.subr.bf16.mxu0 0
    %742 = vmatpush2.bf16.msra.mxu0 0
    %743 = vmatprep.mubr.bf16.mxu0 0
    %744 = vmatmul.mubr.bf16.gmra.mxu0 %v667
    %v745 = vpop.f32.mrf.mxu0
    %v746 = vadd.f32 0.0, %v745
    %v747 = vpop.f32.mrf.mxu0
    %v748 = vpop.f32.mrf.mxu0
    %v749 = vpop.f32.mrf.mxu0
    %750 = vdwg.mxu0
    %v751 = vadd.f32 %v147, %v746
    %v752 = vtanh.pop %v751
    %v753 = vpack.c.bf16 %v752, %v752
    %v754 = vpack.c.bf16 %v710, %v710
    %v756 = vsel %vm165, %v754, 0
    %758 = vmatprep.subr.bf16.mxu0 0
    %759 = vmatpush1.bf16.msra.mxu0 0
    %760 = vmatprep.subr.bf16.mxu0 0
    %761 = vmatpush1.bf16.msra.mxu0 0
    %762 = vmatprep.subr.bf16.mxu0 0
    %763 = vmatpush1.bf16.msra.mxu0 0
    %764 = vmatprep.subr.bf16.mxu0 0
    %765 = vmatpush1.bf16.msra.mxu0 0
    %766 = vmatprep.subr.bf16.mxu0 0
    %767 = vmatpush1.bf16.msra.mxu0 0
    %768 = vmatprep.subr.bf16.mxu0 0
    %769 = vmatpush1.bf16.msra.mxu0 0
    %770 = vmatprep.subr.bf16.mxu0 0
    %771 = vmatpush1.bf16.msra.mxu0 0
    %772 = vmatprep.subr.bf16.mxu0 0
    %773 = vmatpush1.bf16.msra.mxu0 %v221
    %774 = vmatprep.subr.bf16.mxu0 0
    %775 = vmatpush2.bf16.msra.mxu0 0
    %776 = vmatprep.subr.bf16.mxu0 0
    %777 = vmatpush2.bf16.msra.mxu0 0
    %778 = vmatprep.subr.bf16.mxu0 0
    %779 = vmatpush2.bf16.msra.mxu0 0
    %780 = vmatprep.subr.bf16.mxu0 0
    %781 = vmatpush2.bf16.msra.mxu0 0
    %782 = vmatprep.subr.bf16.mxu0 0
    %783 = vmatpush2.bf16.msra.mxu0 0
    %784 = vmatprep.subr.bf16.mxu0 0
    %785 = vmatpush2.bf16.msra.mxu0 0
    %786 = vmatprep.subr.bf16.mxu0 0
    %787 = vmatpush2.bf16.msra.mxu0 0
    %788 = vmatprep.subr.bf16.mxu0 0
    %789 = vmatpush2.bf16.msra.mxu0 0
    %790 = vmatprep.mubr.bf16.mxu0 0
    %791 = vmatmul.mubr.bf16.gmra.mxu0 %v756
    %v792 = vpop.f32.mrf.mxu0
    %v793 = vadd.f32 0.0, %v792
    %v794 = vpop.f32.mrf.mxu0
    %v795 = vpop.f32.mrf.mxu0
    %v796 = vpop.f32.mrf.mxu0
    %797 = vdwg.mxu0
    %v799 = vsel %vm165, %v753, 0
    %801 = vmatprep.subr.bf16.mxu0 0
    %802 = vmatpush1.bf16.msra.mxu0 0
    %803 = vmatprep.subr.bf16.mxu0 0
    %804 = vmatpush1.bf16.msra.mxu0 0
    %805 = vmatprep.subr.bf16.mxu0 0
    %806 = vmatpush1.bf16.msra.mxu0 0
    %807 = vmatprep.subr.bf16.mxu0 0
    %808 = vmatpush1.bf16.msra.mxu0 0
    %809 = vmatprep.subr.bf16.mxu0 0
    %810 = vmatpush1.bf16.msra.mxu0 0
    %811 = vmatprep.subr.bf16.mxu0 0
    %812 = vmatpush1.bf16.msra.mxu0 0
    %813 = vmatprep.subr.bf16.mxu0 0
    %814 = vmatpush1.bf16.msra.mxu0 0
    %815 = vmatprep.subr.bf16.mxu0 0
    %816 = vmatpush1.bf16.msra.mxu0 %v267
    %817 = vmatprep.subr.bf16.mxu0 0
    %818 = vmatpush2.bf16.msra.mxu0 0
    %819 = vmatprep.subr.bf16.mxu0 0
    %820 = vmatpush2.bf16.msra.mxu0 0
    %821 = vmatprep.subr.bf16.mxu0 0
    %822 = vmatpush2.bf16.msra.mxu0 0
    %823 = vmatprep.subr.bf16.mxu0 0
    %824 = vmatpush2.bf16.msra.mxu0 0
    %825 = vmatprep.subr.bf16.mxu0 0
    %826 = vmatpush2.bf16.msra.mxu0 0
    %827 = vmatprep.subr.bf16.mxu0 0
    %828 = vmatpush2.bf16.msra.mxu0 0
    %829 = vmatprep.subr.bf16.mxu0 0
    %830 = vmatpush2.bf16.msra.mxu0 0
    %831 = vmatprep.subr.bf16.mxu0 0
    %832 = vmatpush2.bf16.msra.mxu0 0
    %833 = vmatprep.mubr.bf16.mxu0 0
    %834 = vmatmul.mubr.bf16.gmra.mxu0 %v799
    %v835 = vpop.f32.mrf.mxu0
    %v836 = vadd.f32 %v793, %v835
    %v837 = vpop.f32.mrf.mxu0
    %v838 = vpop.f32.mrf.mxu0
    %v839 = vpop.f32.mrf.mxu0
    %840 = vdwg.mxu0
    %v841 = vadd.f32 %v836, %v312
    %v842 = vtanh.pop %v841
    %843 = vmatprep.subr.bf16.mxu0 0
    %844 = vmatpush1.bf16.msra.mxu0 0
    %845 = vmatprep.subr.bf16.mxu0 0
    %846 = vmatpush1.bf16.msra.mxu0 0
    %847 = vmatprep.subr.bf16.mxu0 0
    %848 = vmatpush1.bf16.msra.mxu0 0
    %849 = vmatprep.subr.bf16.mxu0 0
    %850 = vmatpush1.bf16.msra.mxu0 0
    %851 = vmatprep.subr.bf16.mxu0 0
    %852 = vmatpush1.bf16.msra.mxu0 0
    %853 = vmatprep.subr.bf16.mxu0 0
    %854 = vmatpush1.bf16.msra.mxu0 0
    %855 = vmatprep.subr.bf16.mxu0 0
    %856 = vmatpush1.bf16.msra.mxu0 0
    %857 = vmatprep.subr.bf16.mxu0 0
    %858 = vmatpush1.bf16.msra.mxu0 %v171
    %859 = vmatprep.subr.bf16.mxu0 0
    %860 = vmatpush2.bf16.msra.mxu0 0
    %861 = vmatprep.subr.bf16.mxu0 0
    %862 = vmatpush2.bf16.msra.mxu0 0
    %863 = vmatprep.subr.bf16.mxu0 0
    %864 = vmatpush2.bf16.msra.mxu0 0
    %865 = vmatprep.subr.bf16.mxu0 0
    %866 = vmatpush2.bf16.msra.mxu0 0
    %867 = vmatprep.subr.bf16.mxu0 0
    %868 = vmatpush2.bf16.msra.mxu0 0
    %869 = vmatprep.subr.bf16.mxu0 0
    %870 = vmatpush2.bf16.msra.mxu0 0
    %871 = vmatprep.subr.bf16.mxu0 0
    %872 = vmatpush2.bf16.msra.mxu0 0
    %873 = vmatprep.subr.bf16.mxu0 0
    %874 = vmatpush2.bf16.msra.mxu0 0
    %875 = vmatprep.mubr.bf16.mxu0 0
    %876 = vmatmul.mubr.bf16.gmra.mxu0 %v799
    %v877 = vpop.f32.mrf.mxu0
    %v878 = vadd.f32 0.0, %v877
    %v879 = vpop.f32.mrf.mxu0
    %v880 = vpop.f32.mrf.mxu0
    %v881 = vpop.f32.mrf.mxu0
    %882 = vdwg.mxu0
    %v883 = vadd.f32 %v150, %v878
    %v884 = vtanh.pop %v883
    %v885 = vpack.c.bf16 %v884, %v884
    %v886 = vpack.c.bf16 %v842, %v842
    %v888 = vsel %vm165, %v886, 0
    %890 = vmatprep.subr.bf16.mxu0 0
    %891 = vmatpush1.bf16.msra.mxu0 0
    %892 = vmatprep.subr.bf16.mxu0 0
    %893 = vmatpush1.bf16.msra.mxu0 0
    %894 = vmatprep.subr.bf16.mxu0 0
    %895 = vmatpush1.bf16.msra.mxu0 0
    %896 = vmatprep.subr.bf16.mxu0 0
    %897 = vmatpush1.bf16.msra.mxu0 0
    %898 = vmatprep.subr.bf16.mxu0 0
    %899 = vmatpush1.bf16.msra.mxu0 0
    %900 = vmatprep.subr.bf16.mxu0 0
    %901 = vmatpush1.bf16.msra.mxu0 0
    %902 = vmatprep.subr.bf16.mxu0 0
    %903 = vmatpush1.bf16.msra.mxu0 0
    %904 = vmatprep.subr.bf16.mxu0 0
    %905 = vmatpush1.bf16.msra.mxu0 %v221
    %906 = vmatprep.subr.bf16.mxu0 0
    %907 = vmatpush2.bf16.msra.mxu0 0
    %908 = vmatprep.subr.bf16.mxu0 0
    %909 = vmatpush2.bf16.msra.mxu0 0
    %910 = vmatprep.subr.bf16.mxu0 0
    %911 = vmatpush2.bf16.msra.mxu0 0
    %912 = vmatprep.subr.bf16.mxu0 0
    %913 = vmatpush2.bf16.msra.mxu0 0
    %914 = vmatprep.subr.bf16.mxu0 0
    %915 = vmatpush2.bf16.msra.mxu0 0
    %916 = vmatprep.subr.bf16.mxu0 0
    %917 = vmatpush2.bf16.msra.mxu0 0
    %918 = vmatprep.subr.bf16.mxu0 0
    %919 = vmatpush2.bf16.msra.mxu0 0
    %920 = vmatprep.subr.bf16.mxu0 0
    %921 = vmatpush2.bf16.msra.mxu0 0
    %922 = vmatprep.mubr.bf16.mxu0 0
    %923 = vmatmul.mubr.bf16.gmra.mxu0 %v888
    %v924 = vpop.f32.mrf.mxu0
    %v925 = vadd.f32 0.0, %v924
    %v926 = vpop.f32.mrf.mxu0
    %v927 = vpop.f32.mrf.mxu0
    %v928 = vpop.f32.mrf.mxu0
    %929 = vdwg.mxu0
    %v931 = vsel %vm165, %v885, 0
    %933 = vmatprep.subr.bf16.mxu0 0
    %934 = vmatpush1.bf16.msra.mxu0 0
    %935 = vmatprep.subr.bf16.mxu0 0
    %936 = vmatpush1.bf16.msra.mxu0 0
    %937 = vmatprep.subr.bf16.mxu0 0
    %938 = vmatpush1.bf16.msra.mxu0 0
    %939 = vmatprep.subr.bf16.mxu0 0
    %940 = vmatpush1.bf16.msra.mxu0 0
    %941 = vmatprep.subr.bf16.mxu0 0
    %942 = vmatpush1.bf16.msra.mxu0 0
    %943 = vmatprep.subr.bf16.mxu0 0
    %944 = vmatpush1.bf16.msra.mxu0 0
    %945 = vmatprep.subr.bf16.mxu0 0
    %946 = vmatpush1.bf16.msra.mxu0 0
    %947 = vmatprep.subr.bf16.mxu0 0
    %948 = vmatpush1.bf16.msra.mxu0 %v267
    %949 = vmatprep.subr.bf16.mxu0 0
    %950 = vmatpush2.bf16.msra.mxu0 0
    %951 = vmatprep.subr.bf16.mxu0 0
    %952 = vmatpush2.bf16.msra.mxu0 0
    %953 = vmatprep.subr.bf16.mxu0 0
    %954 = vmatpush2.bf16.msra.mxu0 0
    %955 = vmatprep.subr.bf16.mxu0 0
    %956 = vmatpush2.bf16.msra.mxu0 0
    %957 = vmatprep.subr.bf16.mxu0 0
    %958 = vmatpush2.bf16.msra.mxu0 0
    %959 = vmatprep.subr.bf16.mxu0 0
    %960 = vmatpush2.bf16.msra.mxu0 0
    %961 = vmatprep.subr.bf16.mxu0 0
    %962 = vmatpush2.bf16.msra.mxu0 0
    %963 = vmatprep.subr.bf16.mxu0 0
    %964 = vmatpush2.bf16.msra.mxu0 0
    %965 = vmatprep.mubr.bf16.mxu0 0
    %966 = vmatmul.mubr.bf16.gmra.mxu0 %v931
    %v967 = vpop.f32.mrf.mxu0
    %v968 = vadd.f32 %v925, %v967
    %v969 = vpop.f32.mrf.mxu0
    %v970 = vpop.f32.mrf.mxu0
    %v971 = vpop.f32.mrf.mxu0
    %972 = vdwg.mxu0
    %v973 = vadd.f32 %v968, %v312
    %v974 = vtanh.pop %v973
    %975 = vmatprep.subr.bf16.mxu0 0
    %976 = vmatpush1.bf16.msra.mxu0 0
    %977 = vmatprep.subr.bf16.mxu0 0
    %978 = vmatpush1.bf16.msra.mxu0 0
    %979 = vmatprep.subr.bf16.mxu0 0
    %980 = vmatpush1.bf16.msra.mxu0 0
    %981 = vmatprep.subr.bf16.mxu0 0
    %982 = vmatpush1.bf16.msra.mxu0 0
    %983 = vmatprep.subr.bf16.mxu0 0
    %984 = vmatpush1.bf16.msra.mxu0 0
    %985 = vmatprep.subr.bf16.mxu0 0
    %986 = vmatpush1.bf16.msra.mxu0 0
    %987 = vmatprep.subr.bf16.mxu0 0
    %988 = vmatpush1.bf16.msra.mxu0 0
    %989 = vmatprep.subr.bf16.mxu0 0
    %990 = vmatpush1.bf16.msra.mxu0 %v171
    %991 = vmatprep.subr.bf16.mxu0 0
    %992 = vmatpush2.bf16.msra.mxu0 0
    %993 = vmatprep.subr.bf16.mxu0 0
    %994 = vmatpush2.bf16.msra.mxu0 0
    %995 = vmatprep.subr.bf16.mxu0 0
    %996 = vmatpush2.bf16.msra.mxu0 0
    %997 = vmatprep.subr.bf16.mxu0 0
    %998 = vmatpush2.bf16.msra.mxu0 0
    %999 = vmatprep.subr.bf16.mxu0 0
    %1000 = vmatpush2.bf16.msra.mxu0 0
    %1001 = vmatprep.subr.bf16.mxu0 0
    %1002 = vmatpush2.bf16.msra.mxu0 0
    %1003 = vmatprep.subr.bf16.mxu0 0
    %1004 = vmatpush2.bf16.msra.mxu0 0
    %1005 = vmatprep.subr.bf16.mxu0 0
    %1006 = vmatpush2.bf16.msra.mxu0 0
    %1007 = vmatprep.mubr.bf16.mxu0 0
    %1008 = vmatmul.mubr.bf16.gmra.mxu0 %v931
    %v1009 = vpop.f32.mrf.mxu0
    %v1010 = vadd.f32 0.0, %v1009
    %v1011 = vpop.f32.mrf.mxu0
    %v1012 = vpop.f32.mrf.mxu0
    %v1013 = vpop.f32.mrf.mxu0
    %1014 = vdwg.mxu0
    %v1015 = vadd.f32 %v155, %v1010
    %v1016 = vtanh.pop %v1015
    %v1017 = vpack.c.bf16 %v1016, %v1016
    %v1018 = vpack.c.bf16 %v974, %v974
    %v1020 = vsel %vm165, %v1018, 0
    %1022 = vmatprep.subr.bf16.mxu0 0
    %1023 = vmatpush1.bf16.msra.mxu0 0
    %1024 = vmatprep.subr.bf16.mxu0 0
    %1025 = vmatpush1.bf16.msra.mxu0 0
    %1026 = vmatprep.subr.bf16.mxu0 0
    %1027 = vmatpush1.bf16.msra.mxu0 0
    %1028 = vmatprep.subr.bf16.mxu0 0
    %1029 = vmatpush1.bf16.msra.mxu0 0
    %1030 = vmatprep.subr.bf16.mxu0 0
    %1031 = vmatpush1.bf16.msra.mxu0 0
    %1032 = vmatprep.subr.bf16.mxu0 0
    %1033 = vmatpush1.bf16.msra.mxu0 0
    %1034 = vmatprep.subr.bf16.mxu0 0
    %1035 = vmatpush1.bf16.msra.mxu0 0
    %1036 = vmatprep.subr.bf16.mxu0 0
    %1037 = vmatpush1.bf16.msra.mxu0 %v221
    %1038 = vmatprep.subr.bf16.mxu0 0
    %1039 = vmatpush2.bf16.msra.mxu0 0
    %1040 = vmatprep.subr.bf16.mxu0 0
    %1041 = vmatpush2.bf16.msra.mxu0 0
    %1042 = vmatprep.subr.bf16.mxu0 0
    %1043 = vmatpush2.bf16.msra.mxu0 0
    %1044 = vmatprep.subr.bf16.mxu0 0
    %1045 = vmatpush2.bf16.msra.mxu0 0
    %1046 = vmatprep.subr.bf16.mxu0 0
    %1047 = vmatpush2.bf16.msra.mxu0 0
    %1048 = vmatprep.subr.bf16.mxu0 0
    %1049 = vmatpush2.bf16.msra.mxu0 0
    %1050 = vmatprep.subr.bf16.mxu0 0
    %1051 = vmatpush2.bf16.msra.mxu0 0
    %1052 = vmatprep.subr.bf16.mxu0 0
    %1053 = vmatpush2.bf16.msra.mxu0 0
    %1054 = vmatprep.mubr.bf16.mxu0 0
    %1055 = vmatmul.mubr.bf16.gmra.mxu0 %v1020
    %v1056 = vpop.f32.mrf.mxu0
    %v1057 = vadd.f32 0.0, %v1056
    %v1058 = vpop.f32.mrf.mxu0
    %v1059 = vpop.f32.mrf.mxu0
    %v1060 = vpop.f32.mrf.mxu0
    %1061 = vdwg.mxu0
    %v1063 = vsel %vm165, %v1017, 0
    %1065 = vmatprep.subr.bf16.mxu0 0
    %1066 = vmatpush1.bf16.msra.mxu0 0
    %1067 = vmatprep.subr.bf16.mxu0 0
    %1068 = vmatpush1.bf16.msra.mxu0 0
    %1069 = vmatprep.subr.bf16.mxu0 0
    %1070 = vmatpush1.bf16.msra.mxu0 0
    %1071 = vmatprep.subr.bf16.mxu0 0
    %1072 = vmatpush1.bf16.msra.mxu0 0
    %1073 = vmatprep.subr.bf16.mxu0 0
    %1074 = vmatpush1.bf16.msra.mxu0 0
    %1075 = vmatprep.subr.bf16.mxu0 0
    %1076 = vmatpush1.bf16.msra.mxu0 0
    %1077 = vmatprep.subr.bf16.mxu0 0
    %1078 = vmatpush1.bf16.msra.mxu0 0
    %1079 = vmatprep.subr.bf16.mxu0 0
    %1080 = vmatpush1.bf16.msra.mxu0 %v267
    %1081 = vmatprep.subr.bf16.mxu0 0
    %1082 = vmatpush2.bf16.msra.mxu0 0
    %1083 = vmatprep.subr.bf16.mxu0 0
    %1084 = vmatpush2.bf16.msra.mxu0 0
    %1085 = vmatprep.subr.bf16.mxu0 0
    %1086 = vmatpush2.bf16.msra.mxu0 0
    %1087 = vmatprep.subr.bf16.mxu0 0
    %1088 = vmatpush2.bf16.msra.mxu0 0
    %1089 = vmatprep.subr.bf16.mxu0 0
    %1090 = vmatpush2.bf16.msra.mxu0 0
    %1091 = vmatprep.subr.bf16.mxu0 0
    %1092 = vmatpush2.bf16.msra.mxu0 0
    %1093 = vmatprep.subr.bf16.mxu0 0
    %1094 = vmatpush2.bf16.msra.mxu0 0
    %1095 = vmatprep.subr.bf16.mxu0 0
    %1096 = vmatpush2.bf16.msra.mxu0 0
    %1097 = vmatprep.mubr.bf16.mxu0 0
    %1098 = vmatmul.mubr.bf16.gmra.mxu0 %v1063
    %v1099 = vpop.f32.mrf.mxu0
    %v1100 = vadd.f32 %v1057, %v1099
    %v1101 = vpop.f32.mrf.mxu0
    %v1102 = vpop.f32.mrf.mxu0
    %v1103 = vpop.f32.mrf.mxu0
    %1104 = vdwg.mxu0
    %v1105 = vadd.f32 %v1100, %v312
    %v1106 = vtanh.pop %v1105
    %1107 = vmatprep.subr.bf16.mxu0 0
    %1108 = vmatpush1.bf16.msra.mxu0 0
    %1109 = vmatprep.subr.bf16.mxu0 0
    %1110 = vmatpush1.bf16.msra.mxu0 0
    %1111 = vmatprep.subr.bf16.mxu0 0
    %1112 = vmatpush1.bf16.msra.mxu0 0
    %1113 = vmatprep.subr.bf16.mxu0 0
    %1114 = vmatpush1.bf16.msra.mxu0 0
    %1115 = vmatprep.subr.bf16.mxu0 0
    %1116 = vmatpush1.bf16.msra.mxu0 0
    %1117 = vmatprep.subr.bf16.mxu0 0
    %1118 = vmatpush1.bf16.msra.mxu0 0
    %1119 = vmatprep.subr.bf16.mxu0 0
    %1120 = vmatpush1.bf16.msra.mxu0 0
    %1121 = vmatprep.subr.bf16.mxu0 0
    %1122 = vmatpush1.bf16.msra.mxu0 %v171
    %1123 = vmatprep.subr.bf16.mxu0 0
    %1124 = vmatpush2.bf16.msra.mxu0 0
    %1125 = vmatprep.subr.bf16.mxu0 0
    %1126 = vmatpush2.bf16.msra.mxu0 0
    %1127 = vmatprep.subr.bf16.mxu0 0
    %1128 = vmatpush2.bf16.msra.mxu0 0
    %1129 = vmatprep.subr.bf16.mxu0 0
    %1130 = vmatpush2.bf16.msra.mxu0 0
    %1131 = vmatprep.subr.bf16.mxu0 0
    %1132 = vmatpush2.bf16.msra.mxu0 0
    %1133 = vmatprep.subr.bf16.mxu0 0
    %1134 = vmatpush2.bf16.msra.mxu0 0
    %1135 = vmatprep.subr.bf16.mxu0 0
    %1136 = vmatpush2.bf16.msra.mxu0 0
    %1137 = vmatprep.subr.bf16.mxu0 0
    %1138 = vmatpush2.bf16.msra.mxu0 0
    %1139 = vmatprep.mubr.bf16.mxu0 0
    %1140 = vmatmul.mubr.bf16.gmra.mxu0 %v1063
    %v1141 = vpop.f32.mrf.mxu0
    %v1142 = vadd.f32 0.0, %v1141
    %v1143 = vpop.f32.mrf.mxu0
    %v1144 = vpop.f32.mrf.mxu0
    %v1145 = vpop.f32.mrf.mxu0
    %1146 = vdwg.mxu0
    %v1147 = vadd.f32 %v158, %v1142
    %v1148 = vtanh.pop %v1147
    %v1149 = vpack.c.bf16 %v1148, %v1148
    %v1150 = vpack.c.bf16 %v1106, %v1106
    %v1152 = vsel %vm165, %v1150, 0
    %1154 = vmatprep.subr.bf16.mxu0 0
    %1155 = vmatpush1.bf16.msra.mxu0 0
    %1156 = vmatprep.subr.bf16.mxu0 0
    %1157 = vmatpush1.bf16.msra.mxu0 0
    %1158 = vmatprep.subr.bf16.mxu0 0
    %1159 = vmatpush1.bf16.msra.mxu0 0
    %1160 = vmatprep.subr.bf16.mxu0 0
    %1161 = vmatpush1.bf16.msra.mxu0 0
    %1162 = vmatprep.subr.bf16.mxu0 0
    %1163 = vmatpush1.bf16.msra.mxu0 0
    %1164 = vmatprep.subr.bf16.mxu0 0
    %1165 = vmatpush1.bf16.msra.mxu0 0
    %1166 = vmatprep.subr.bf16.mxu0 0
    %1167 = vmatpush1.bf16.msra.mxu0 0
    %1168 = vmatprep.subr.bf16.mxu0 0
    %1169 = vmatpush1.bf16.msra.mxu0 %v221
    %1170 = vmatprep.subr.bf16.mxu0 0
    %1171 = vmatpush2.bf16.msra.mxu0 0
    %1172 = vmatprep.subr.bf16.mxu0 0
    %1173 = vmatpush2.bf16.msra.mxu0 0
    %1174 = vmatprep.subr.bf16.mxu0 0
    %1175 = vmatpush2.bf16.msra.mxu0 0
    %1176 = vmatprep.subr.bf16.mxu0 0
    %1177 = vmatpush2.bf16.msra.mxu0 0
    %1178 = vmatprep.subr.bf16.mxu0 0
    %1179 = vmatpush2.bf16.msra.mxu0 0
    %1180 = vmatprep.subr.bf16.mxu0 0
    %1181 = vmatpush2.bf16.msra.mxu0 0
    %1182 = vmatprep.subr.bf16.mxu0 0
    %1183 = vmatpush2.bf16.msra.mxu0 0
    %1184 = vmatprep.subr.bf16.mxu0 0
    %1185 = vmatpush2.bf16.msra.mxu0 0
    %1186 = vmatprep.mubr.bf16.mxu0 0
    %1187 = vmatmul.mubr.bf16.gmra.mxu0 %v1152
    %v1188 = vpop.f32.mrf.mxu0
    %v1189 = vadd.f32 0.0, %v1188
    %v1190 = vpop.f32.mrf.mxu0
    %v1191 = vpop.f32.mrf.mxu0
    %v1192 = vpop.f32.mrf.mxu0
    %1193 = vdwg.mxu0
    %v1195 = vsel %vm165, %v1149, 0
    %1197 = vmatprep.subr.bf16.mxu0 0
    %1198 = vmatpush1.bf16.msra.mxu0 0
    %1199 = vmatprep.subr.bf16.mxu0 0
    %1200 = vmatpush1.bf16.msra.mxu0 0
    %1201 = vmatprep.subr.bf16.mxu0 0
    %1202 = vmatpush1.bf16.msra.mxu0 0
    %1203 = vmatprep.subr.bf16.mxu0 0
    %1204 = vmatpush1.bf16.msra.mxu0 0
    %1205 = vmatprep.subr.bf16.mxu0 0
    %1206 = vmatpush1.bf16.msra.mxu0 0
    %1207 = vmatprep.subr.bf16.mxu0 0
    %1208 = vmatpush1.bf16.msra.mxu0 0
    %1209 = vmatprep.subr.bf16.mxu0 0
    %1210 = vmatpush1.bf16.msra.mxu0 0
    %1211 = vmatprep.subr.bf16.mxu0 0
    %1212 = vmatpush1.bf16.msra.mxu0 %v267
    %1213 = vmatprep.subr.bf16.mxu0 0
    %1214 = vmatpush2.bf16.msra.mxu0 0
    %1215 = vmatprep.subr.bf16.mxu0 0
    %1216 = vmatpush2.bf16.msra.mxu0 0
    %1217 = vmatprep.subr.bf16.mxu0 0
    %1218 = vmatpush2.bf16.msra.mxu0 0
    %1219 = vmatprep.subr.bf16.mxu0 0
    %1220 = vmatpush2.bf16.msra.mxu0 0
    %1221 = vmatprep.subr.bf16.mxu0 0
    %1222 = vmatpush2.bf16.msra.mxu0 0
    %1223 = vmatprep.subr.bf16.mxu0 0
    %1224 = vmatpush2.bf16.msra.mxu0 0
    %1225 = vmatprep.subr.bf16.mxu0 0
    %1226 = vmatpush2.bf16.msra.mxu0 0
    %1227 = vmatprep.subr.bf16.mxu0 0
    %1228 = vmatpush2.bf16.msra.mxu0 0
    %1229 = vmatprep.mubr.bf16.mxu0 0
    %1230 = vmatmul.mubr.bf16.gmra.mxu0 %v1195
    %v1231 = vpop.f32.mrf.mxu0
    %v1232 = vadd.f32 %v1189, %v1231
    %v1233 = vpop.f32.mrf.mxu0
    %v1234 = vpop.f32.mrf.mxu0
    %v1235 = vpop.f32.mrf.mxu0
    %1236 = vdwg.mxu0
    %v1237 = vadd.f32 %v1232, %v312
    %v1238 = vtanh.pop %v1237
    %v1239 = vpack.c.bf16 %v1238, %v1238
    %v1240 = vlaneseq
    %v1241 = vshrl.u32 %v1240, 7
    %v1242 = vsub.s32 2, %v1241
    %v1243 = vrot.slane %v46, %v1242
    %v1245 = vsel %vm165, %v1239, 0
    %v1248 = vsel %vm169, %v37, 0
    %1250 = vmatprep.subr.bf16.mxu0 0
    %1251 = vmatpush1.bf16.msra.mxu0 0
    %1252 = vmatprep.subr.bf16.mxu0 0
    %1253 = vmatpush1.bf16.msra.mxu0 0
    %1254 = vmatprep.subr.bf16.mxu0 0
    %1255 = vmatpush1.bf16.msra.mxu0 0
    %1256 = vmatprep.subr.bf16.mxu0 0
    %1257 = vmatpush1.bf16.msra.mxu0 0
    %1258 = vmatprep.subr.bf16.mxu0 0
    %1259 = vmatpush1.bf16.msra.mxu0 0
    %1260 = vmatprep.subr.bf16.mxu0 0
    %1261 = vmatpush1.bf16.msra.mxu0 0
    %1262 = vmatprep.subr.bf16.mxu0 0
    %1263 = vmatpush1.bf16.msra.mxu0 0
    %1264 = vmatprep.subr.bf16.mxu0 0
    %1265 = vmatpush1.bf16.msra.mxu0 %v1248
    %1266 = vmatprep.subr.bf16.mxu0 0
    %1267 = vmatpush2.bf16.msra.mxu0 0
    %1268 = vmatprep.subr.bf16.mxu0 0
    %1269 = vmatpush2.bf16.msra.mxu0 0
    %1270 = vmatprep.subr.bf16.mxu0 0
    %1271 = vmatpush2.bf16.msra.mxu0 0
    %1272 = vmatprep.subr.bf16.mxu0 0
    %1273 = vmatpush2.bf16.msra.mxu0 0
    %1274 = vmatprep.subr.bf16.mxu0 0
    %1275 = vmatpush2.bf16.msra.mxu0 0
    %1276 = vmatprep.subr.bf16.mxu0 0
    %1277 = vmatpush2.bf16.msra.mxu0 0
    %1278 = vmatprep.subr.bf16.mxu0 0
    %1279 = vmatpush2.bf16.msra.mxu0 0
    %1280 = vmatprep.subr.bf16.mxu0 0
    %1281 = vmatpush2.bf16.msra.mxu0 0
    %1282 = vmatprep.mubr.bf16.mxu0 0
    %1283 = vmatmul.mubr.bf16.gmra.mxu0 %v1245
    %v1284 = vpop.f32.mrf.mxu0
    %v1285 = vadd.f32 %v1243, %v1284
    %v1286 = vpop.f32.mrf.mxu0
    %v1287 = vpop.f32.mrf.mxu0
    %v1288 = vpop.f32.mrf.mxu0
    %1289 = vdwg.mxu0
    %v1290 = vmax.f32 %v1285, 0.0
    %v1291 = vpack.c.bf16 %v1290, %v1290
    %v1292 = vlaneseq
    %v1293 = vshrl.u32 %v1292, 7
    %v1294 = vsub.s32 3, %v1293
    %v1295 = vrot.slane %v46, %v1294
    %v1304 = vunpack.c.l.b16 %v38
    %v1305 = vunpack.c.l.b16 %v39
    %v1306 = vunpack.c.l.b16 %v40
    %v1307 = vunpack.c.l.b16 %v41
    %v1308 = vunpack.c.l.b16 %v42
    %v1309 = vunpack.c.l.b16 %v43
    %v1310 = vunpack.c.l.b16 %v44
    %v1311 = vunpack.c.l.b16 %v45
    %v1312 = vpack.c.b16 %v1305, %v1304
    %v1313 = vpack.c.b16 %v1307, %v1306
    %v1314 = vpack.c.b16 %v1309, %v1308
    %v1315 = vpack.c.b16 %v1311, %v1310
    %vm1320 = vcmask 523264
    %v1322 = vsel %vm1320, %v1291, 0
    %1324 = vmatprep.subr.bf16.mxu0 0
    %1325 = vmatpush1.bf16.msra.mxu0 0
    %1326 = vmatprep.subr.bf16.mxu0 0
    %1327 = vmatpush1.bf16.msra.mxu0 0
    %1328 = vmatprep.subr.bf16.mxu0 0
    %1329 = vmatpush1.bf16.msra.mxu0 0
    %1330 = vmatprep.subr.bf16.mxu0 0
    %1331 = vmatpush1.bf16.msra.mxu0 0
    %1332 = vmatprep.subr.bf16.mxu0 0
    %1333 = vmatpush1.bf16.msra.mxu0 %v1315
    %1334 = vmatprep.subr.bf16.mxu0 0
    %1335 = vmatpush1.bf16.msra.mxu0 %v1314
    %1336 = vmatprep.subr.bf16.mxu0 0
    %1337 = vmatpush1.bf16.msra.mxu0 %v1313
    %1338 = vmatprep.subr.bf16.mxu0 0
    %1339 = vmatpush1.bf16.msra.mxu0 %v1312
    %1340 = vmatprep.subr.bf16.mxu0 0
    %1341 = vmatpush2.bf16.msra.mxu0 0
    %1342 = vmatprep.subr.bf16.mxu0 0
    %1343 = vmatpush2.bf16.msra.mxu0 0
    %1344 = vmatprep.subr.bf16.mxu0 0
    %1345 = vmatpush2.bf16.msra.mxu0 0
    %1346 = vmatprep.subr.bf16.mxu0 0
    %1347 = vmatpush2.bf16.msra.mxu0 0
    %1348 = vmatprep.subr.bf16.mxu0 0
    %1349 = vmatpush2.bf16.msra.mxu0 0
    %1350 = vmatprep.subr.bf16.mxu0 0
    %1351 = vmatpush2.bf16.msra.mxu0 0
    %1352 = vmatprep.subr.bf16.mxu0 0
    %1353 = vmatpush2.bf16.msra.mxu0 0
    %1354 = vmatprep.subr.bf16.mxu0 0
    %1355 = vmatpush2.bf16.msra.mxu0 0
    %1356 = vmatprep.mubr.bf16.mxu0 0
    %1357 = vmatmul.mubr.bf16.gmra.mxu0 %v1322
    %v1358 = vpop.f32.mrf.mxu0
    %v1359 = vadd.f32 %v1295, %v1358
    %v1360 = vpop.f32.mrf.mxu0
    %v1361 = vpop.f32.mrf.mxu0
    %v1362 = vpop.f32.mrf.mxu0
    %1363 = vdwg.mxu0
    %1364 = vst [vmem:[#allocation5] sm:$0xff] %v1359
    // Predicated region
    $region22: #{tpu_custom_call.1} parent=1 // pred_check
      _
    $region23: #{tpu_custom_call.1} parent=1 // pred_check_branch
      %1366 = sbr.rel (0) target = $region25
    $region24: #{tpu_custom_call.1} parent=1 // pred_region
      %s1368 = ssub.s32 128, 128
      %1369 = vsyncadd [#allocation4], %s1368
      %s1371 = sshll.u32 [#allocation5], 4
      %s1372 = int_to_ptr.vmem [resolvable:$true] %s1371
      %1374 = dma.vmem_to_hbm [thread:$0]  %s1372, 128, %s4, [#allocation4]
    $region25: #{tpu_custom_call.1} parent=1 // pred_fallthru
      _
    // Predicated region
    $region26: #{tpu_custom_call.1} parent=1 // pred_check
      _
    $region27: #{tpu_custom_call.1} parent=1 // pred_check_branch
      %1376 = sbr.rel (0) target = $region29
    $region28: #{tpu_custom_call.1} parent=1 // pred_region
      %1377 = dma.done [#allocation4], 128
    $region29: #{tpu_custom_call.1} parent=1 // pred_fallthru
      _
    %1378 = vsyncpa [#allocation3], 1
    %1379 = vsyncpa [#allocation4], 1

</llo_original>
